<compile_context>
chip_gen: v6e
topology: v6e:2x2x1
jax: 0.10.0
libtpu: 0.0.40
codegen_flags: <defaults>
</compile_context>

<pallas_src>
import jax
import jax.numpy as jnp
import numpy as np
from jax.experimental import pallas as pl
from jax.experimental.pallas import tpu as pltpu

_LANE = 128
_ROWS = 16  # bf16 sublane tile for the LHS


def _round_up(n, m):
    return ((n + m - 1) // m) * m


# --------------------------------------------------------------------------
# Pallas kernel: one matmul + bias for the whole (collapsed) network.
# --------------------------------------------------------------------------
def _affine_kernel(x_ref, a_ref, b_ref, o_ref):
    # x:(16, K) bf16, a:(K, N) bf16, b:(1, N) f32  ->  o:(16, N) f32
    o_ref[...] = (
        jnp.dot(x_ref[...], a_ref[...], preferred_element_type=jnp.float32)
        + b_ref[...]
    )


# --------------------------------------------------------------------------
# Pure-JAX reference (lhs-dilated conv with flipped, transposed kernel).
# --------------------------------------------------------------------------
def _ref_conv_transpose2d(x, w, b, *, stride, padding, output_padding):
    cin, cout, K, _ = w.shape
    w_conv = jnp.flip(jnp.transpose(w, (1, 0, 2, 3)), axis=(2, 3))  # (O,I,K,K)
    lo = K - 1 - padding
    hi = K - 1 - padding + output_padding
    return jax.lax.conv_general_dilated(
        x, w_conv, window_strides=(1, 1), padding=[(lo, hi), (lo, hi)],
        lhs_dilation=(stride, stride), rhs_dilation=(1, 1),
        dimension_numbers=("NCHW", "OIHW", "NCHW"),
        precision=jax.lax.Precision.HIGHEST,
    ) + b.reshape(1, cout, 1, 1)


# --------------------------------------------------------------------------
# Model: ConvTranspose2d(40,64,3,1,0,1) -> (64,48,5,2,2,1)
#        -> (48,32,5,1,2,1) -> (32,4,1,1,0,1)
# --------------------------------------------------------------------------
class Model:
    _CFG = [
        dict(cin=40, cout=64, k=3, stride=1, padding=0, output_padding=1),
        dict(cin=64, cout=48, k=5, stride=2, padding=2, output_padding=1),
        dict(cin=48, cout=32, k=5, stride=1, padding=2, output_padding=1),
        dict(cin=32, cout=4, k=1, stride=1, padding=0, output_padding=1),
    ]
    _H_IN = 4
    _W_IN = 4

    def __init__(self, key):
        # ---- random parameters (torch layout), used by both paths ---------
        self.torch_params = []
        keys = jax.random.split(key, len(self._CFG))
        for cfg, k in zip(self._CFG, keys):
            kw_key, kb_key = jax.random.split(k)
            cin, cout, K = cfg["cin"], cfg["cout"], cfg["k"]
            bound = float(1.0 / np.sqrt(cin * K * K))
            w = jax.random.uniform(kw_key, (cin, cout, K, K), jnp.float32,
                                   -bound, bound)
            b = jax.random.uniform(kb_key, (cout,), jnp.float32, -bound, bound)
            self.torch_params.append((w, b))

        # ---- output geometry ----------------------------------------------
        hi, wi = self._H_IN, self._W_IN
        for cfg in self._CFG:
            s, p, op, K = cfg["stride"], cfg["padding"], cfg["output_padding"], cfg["k"]
            hi = (hi - 1) * s - 2 * p + (K - 1) + op + 1
            wi = (wi - 1) * s - 2 * p + (K - 1) + op + 1
        self._h_out, self._w_out = hi, wi
        self._c_in = self._CFG[0]["cin"]
        self._c_out = self._CFG[-1]["cout"]

        n_in = self._c_in * self._H_IN * self._W_IN          # 640
        n_out = self._c_out * self._h_out * self._w_out       # 1024
        n_in_pad = _round_up(n_in, _LANE)
        n_out_pad = _round_up(n_out, _LANE)

        # ---- collapse the 4 linear layers into one affine map (host-side,
        #      once).  A[i, :] = stack(e_i) - stack(0);  b = stack(0). -------
        def stack(x):
            v = x
            for cfg, (w, b) in zip(self._CFG, self.torch_params):
                v = _ref_conv_transpose2d(
                    v, w, b, stride=cfg["stride"], padding=cfg["padding"],
                    output_padding=cfg["output_padding"])
            return v

        bias = np.asarray(
            stack(jnp.zeros((1, self._c_in, self._H_IN, self._W_IN),
                            jnp.float32))).reshape(-1)                 # (1024,)
        basis = jnp.eye(n_in, dtype=jnp.float32).reshape(
            n_in, self._c_in, self._H_IN, self._W_IN)
        a_full = np.asarray(stack(basis)).reshape(n_in, -1) - bias[None, :]

        a_pad = np.zeros((n_in_pad, n_out_pad), np.float32)
        a_pad[:n_in, :n_out] = a_full
        b_pad = np.zeros((1, n_out_pad), np.float32)
        b_pad[0, :n_out] = bias

        # bf16 weights (f32 accumulation in the kernel); bias stays f32.
        self._a = jnp.asarray(a_pad, jnp.bfloat16)             # (640, 1024)
        self._b = jnp.asarray(b_pad, jnp.float32)               # (1, 1024)

        # ---- the single pallas_call ----------------------------------------
        fused = pl.pallas_call(
            _affine_kernel,
            out_shape=jax.ShapeDtypeStruct((_ROWS, n_out_pad), jnp.float32),
            in_specs=[pl.BlockSpec(memory_space=pltpu.MemorySpace.VMEM)] * 3,
            out_specs=pl.BlockSpec(memory_space=pltpu.MemorySpace.VMEM),
        )

        c_out, h_out, w_out = self._c_out, self._h_out, self._w_out

        def forward(x1, a_mat, bias_row):
            # (1, 40, 4, 4) NCHW -> flat row, bf16, padded to (16, 640).
            x = x1.reshape(1, n_in).astype(jnp.bfloat16)
            x = jnp.pad(x, ((0, _ROWS - 1), (0, n_in_pad - n_in)))
            y = fused(x, a_mat, bias_row)                       # (16, 1024) f32
            return y[0, :n_out].reshape(1, c_out, h_out, w_out)

        self._forward = jax.jit(forward)

    def __call__(self, x1):
        return self._forward(x1, self._a, self._b)

    def reference(self, x1):
        v = x1
        for cfg, (w, b) in zip(self._CFG, self.torch_params):
            v = _ref_conv_transpose2d(v, w, b, stride=cfg["stride"],
                                      padding=cfg["padding"],
                                      output_padding=cfg["output_padding"])
        return v


if __name__ == "__main__":
    key = jax.random.PRNGKey(0)
    k_x, k_m = jax.random.split(key)
    x1 = jax.random.normal(k_x, (1, 40, 4, 4), jnp.float32)

    model = Model(k_m)
    out = jax.block_until_ready(model(x1))
    assert out.shape == (1, 4, 16, 16), out.shape

    ref = jax.block_until_ready(model.reference(x1))
    np.testing.assert_allclose(np.asarray(out), np.asarray(ref),
                               rtol=5e-2, atol=5e-2)
    print("KERNEL_OK")
</pallas_src>

<mosaic_0001>
module attributes {stable_mosaic.version = 11 : i64} {
  func.func @_affine_kernel(%arg0: memref<16x640xbf16, #tpu.memory_space<vmem>>, %arg1: memref<640x1024xbf16, #tpu.memory_space<vmem>>, %arg2: memref<1x1024xf32, #tpu.memory_space<vmem>>, %arg3: memref<16x1024xf32, #tpu.memory_space<vmem>>) attributes {dimension_semantics = [], scalar_prefetch = 0 : i64, scratch_operands = 0 : i64, tpu.core_type = #tpu.core_type<tc>} {
    %c0 = arith.constant 0 : index
    %c0_0 = arith.constant 0 : index
    %0 = vector.load %arg0[%c0, %c0_0] : memref<16x640xbf16, #tpu.memory_space<vmem>>, vector<16x640xbf16>
    %c0_1 = arith.constant 0 : index
    %c0_2 = arith.constant 0 : index
    %1 = vector.load %arg1[%c0_1, %c0_2] : memref<640x1024xbf16, #tpu.memory_space<vmem>>, vector<640x1024xbf16>
    %cst = arith.constant dense<0.000000e+00> : vector<16x1024xf32>
    %2 = tpu.matmul %0, %1, %cst {dimension_numbers = #tpu.dot_dimension_numbers<[1], [0], [0], [1], [0, 0, 1, 1], [], []>} : vector<16x640xbf16>, vector<640x1024xbf16>, vector<16x1024xf32> -> vector<16x1024xf32>
    %c0_3 = arith.constant 0 : index
    %c0_4 = arith.constant 0 : index
    %3 = vector.load %arg2[%c0_3, %c0_4] : memref<1x1024xf32, #tpu.memory_space<vmem>>, vector<1x1024xf32>
    %4 = vector.broadcast %3 : vector<1x1024xf32> to vector<16x1024xf32>
    %5 = arith.addf %2, %4 : vector<16x1024xf32>
    %c0_5 = arith.constant 0 : index
    %c0_6 = arith.constant 0 : index
    %6 = vector.load %arg3[%c0_5, %c0_6] : memref<16x1024xf32, #tpu.memory_space<vmem>>, vector<16x1024xf32>
    tpu.vector_store %arg3[%c0_5, %c0_6], %5 {strides = array<i32>} : memref<16x1024xf32, #tpu.memory_space<vmem>>, vector<16x1024xf32>,
    return
  }
}

</mosaic_0001>

<llo_original>
// kernel: squeeze.1
$region0: #{squeeze.1}
  %s0 = inlined_call_operand.vmem [shape: f32[1024], index: 0, kind: input, shape index: {}]
  %s1 = inlined_call_operand.hbm [shape: f32[1,4,16,16], index: 1, kind: output, shape index: {}]
  $region1: #{squeeze.1} parent=0
    #allocation0 [shape = 'u8[32768]{0}', space=vmem, size = 0x8000, scoped, tag = 'operand span for operand 1']
    #allocation1 [shape = 's32[1]{0}', space=sflag, size = 0x4, scoped, tag = 'scoped memory for squeeze.1']
    %2 = vsyncpa [#allocation1], 0
    %v3 = vld [vmem:[%s0] sm:$0xff]
    %vm4 = vcmask 130048
    %5 = vst.msk [vmem:[#allocation0] ss:$8 sm:$0xf] %vm4, %v3
    %6 = vst.msk [vmem:[#allocation0] ss:$8 sm:$0xf0] %vm4, %v3
    %v7 = vld [vmem:[%s0] sm:$0xff]
    %8 = vrot.lane.b32.xlu0 %v7, 112
    %v9 = vpop.permute.xlu0 %8
    %vm10 = vcmask 130048
    %s11 = scalar_lea.vmem [#allocation0], 1
    %12 = vst.msk [vmem:[%s11] ss:$8 sm:$0xf] %vm10, %v9
    %s13 = scalar_lea.vmem [#allocation0], 1
    %14 = vst.msk [vmem:[%s13] ss:$8 sm:$0xf0] %vm10, %v9
    %v15 = vld [vmem:[%s0] sm:$0xff]
    %16 = vrot.lane.b32.xlu0 %v15, 96
    %v17 = vpop.permute.xlu0 %16
    %vm18 = vcmask 130048
    %s19 = scalar_lea.vmem [#allocation0], 2
    %20 = vst.msk [vmem:[%s19] ss:$8 sm:$0xf] %vm18, %v17
    %s21 = scalar_lea.vmem [#allocation0], 2
    %22 = vst.msk [vmem:[%s21] ss:$8 sm:$0xf0] %vm18, %v17
    %v23 = vld [vmem:[%s0] sm:$0xff]
    %24 = vrot.lane.b32.xlu0 %v23, 80
    %v25 = vpop.permute.xlu0 %24
    %vm26 = vcmask 130048
    %s27 = scalar_lea.vmem [#allocation0], 3
    %28 = vst.msk [vmem:[%s27] ss:$8 sm:$0xf] %vm26, %v25
    %s29 = scalar_lea.vmem [#allocation0], 3
    %30 = vst.msk [vmem:[%s29] ss:$8 sm:$0xf0] %vm26, %v25
    %v31 = vld [vmem:[%s0] sm:$0xff]
    %32 = vrot.lane.b32.xlu0 %v31, 64
    %v33 = vpop.permute.xlu0 %32
    %vm34 = vcmask 130048
    %s35 = scalar_lea.vmem [#allocation0], 4
    %36 = vst.msk [vmem:[%s35] ss:$8 sm:$0xf] %vm34, %v33
    %s37 = scalar_lea.vmem [#allocation0], 4
    %38 = vst.msk [vmem:[%s37] ss:$8 sm:$0xf0] %vm34, %v33
    %v39 = vld [vmem:[%s0] sm:$0xff]
    %40 = vrot.lane.b32.xlu0 %v39, 48
    %v41 = vpop.permute.xlu0 %40
    %vm42 = vcmask 130048
    %s43 = scalar_lea.vmem [#allocation0], 5
    %44 = vst.msk [vmem:[%s43] ss:$8 sm:$0xf] %vm42, %v41
    %s45 = scalar_lea.vmem [#allocation0], 5
    %46 = vst.msk [vmem:[%s45] ss:$8 sm:$0xf0] %vm42, %v41
    %v47 = vld [vmem:[%s0] sm:$0xff]
    %48 = vrot.lane.b32.xlu0 %v47, 32
    %v49 = vpop.permute.xlu0 %48
    %vm50 = vcmask 130048
    %s51 = scalar_lea.vmem [#allocation0], 6
    %52 = vst.msk [vmem:[%s51] ss:$8 sm:$0xf] %vm50, %v49
    %s53 = scalar_lea.vmem [#allocation0], 6
    %54 = vst.msk [vmem:[%s53] ss:$8 sm:$0xf0] %vm50, %v49
    %v55 = vld [vmem:[%s0] sm:$0xff]
    %56 = vrot.lane.b32.xlu0 %v55, 16
    %v57 = vpop.permute.xlu0 %56
    %vm58 = vcmask 130048
    %s59 = scalar_lea.vmem [#allocation0], 7
    %60 = vst.msk [vmem:[%s59] ss:$8 sm:$0xf] %vm58, %v57
    %s61 = scalar_lea.vmem [#allocation0], 7
    %62 = vst.msk [vmem:[%s61] ss:$8 sm:$0xf0] %vm58, %v57
    %s64 = ssub.s32 1024, 1024
    %65 = vsyncadd [#allocation1], %s64
    %s67 = sshll.u32 [#allocation0], 4
    %s68 = int_to_ptr.vmem [resolvable:$true] %s67
    %70 = dma.vmem_to_hbm [thread:$0]  %s68, 1024, %s1, [#allocation1]
    %71 = dma.done [#allocation1], 1024
    %72 = vsyncpa [#allocation1], 1

// kernel: forward.1
$region0: #{forward.1}
  #allocation0 [shape = 'u32[]', space=smem, size = 0x4, offset = 0x4, fixed_abs, tag = 'smem constant byte address 0x4 - core index']
  #allocation1 [shape = 'u32[144,128]{1,0:T(1,128)}', space=vmem, size = 0x12000, scoped, tag = 'internal scratch']
  %s0 = inlined_call_operand.vmem [shape: bf16[16,640], index: 0, kind: input, shape index: {}]
  %s1 = inlined_call_operand.hbm [shape: bf16[640,1024], index: 1, kind: input, shape index: {}]
  %s2 = inlined_call_operand.hbm [shape: f32[1,1024], index: 2, kind: input, shape index: {}]
  %s3 = inlined_call_operand.vmem [shape: f32[16,1024], index: 3, kind: output, shape index: {}]
  %s4 = sld [smem:[#allocation0]]
  $region30: #{forward.1} parent=0
    _
  %s6 = ssub.s32 1, %s4
  %s7 = scalar_select 0, %s6, %s4
  $region1: #{forward.1} parent=0
    #allocation2 [shape = 'u8[1310720]{0}', space=vmem, size = 0x140000, scoped, tag = 'input window, operand 1, single buffered']
    #allocation3 [shape = 's32[1]{0}', space=sflag, size = 0x4, scoped, tag = 'scoped memory for forward.1']
    #allocation4 [shape = 'u8[4096]{0}', space=vmem, size = 0x1000, scoped, tag = 'input window, operand 2, single buffered']
    #allocation5 [shape = 's32[1]{0}', space=sflag, size = 0x4, scoped, tag = 'scoped memory for forward.1']
    %8 = vsyncpa [#allocation3], 0
    %9 = vsyncpa [#allocation5], 0
    // Predicated region
    $region2: #{forward.1} parent=1 // pred_check
      _
    $region3: #{forward.1} parent=1 // pred_check_branch
      %11 = sbr.rel (0) target = $region5
    $region4: #{forward.1} parent=1 // pred_region
      _
    $region5: #{forward.1} parent=1 // pred_fallthru
      _
    // Predicated region
    $region6: #{forward.1} parent=1 // pred_check
      _
    $region7: #{forward.1} parent=1 // pred_check_branch
      %13 = sbr.rel (0) target = $region9
    $region8: #{forward.1} parent=1 // pred_region
      %s15 = ssub.s32 40960, 40960
      %16 = vsyncadd [#allocation3], %s15
      %s17 = sshll.u32 [#allocation2], 4
      %s18 = int_to_ptr.vmem [resolvable:$true] %s17
      %23 = dma.hbm_to_vmem [thread:$0]  %s1, 40960, %s18, [#allocation3], 512, 512, 32
    $region9: #{forward.1} parent=1 // pred_fallthru
      _
    // Predicated region
    $region10: #{forward.1} parent=1 // pred_check
      _
    $region11: #{forward.1} parent=1 // pred_check_branch
      %25 = sbr.rel (0) target = $region13
    $region12: #{forward.1} parent=1 // pred_region
      %s27 = ssub.s32 128, 128
      %28 = vsyncadd [#allocation5], %s27
      %s30 = sshll.u32 [#allocation4], 4
      %s31 = int_to_ptr.vmem [resolvable:$true] %s30
      %33 = dma.hbm_to_vmem [thread:$0]  %s2, 128, %s31, [#allocation5]
    $region13: #{forward.1} parent=1 // pred_fallthru
      _
    // Predicated region
    $region14: #{forward.1} parent=1 // pred_check
      _
    $region15: #{forward.1} parent=1 // pred_check_branch
      %35 = sbr.rel (0) target = $region17
    $region16: #{forward.1} parent=1 // pred_region
      %36 = dma.done [#allocation3], 40960
    $region17: #{forward.1} parent=1 // pred_fallthru
      _
    // Predicated region
    $region18: #{forward.1} parent=1 // pred_check
      _
    $region19: #{forward.1} parent=1 // pred_check_branch
      %38 = sbr.rel (0) target = $region21
    $region20: #{forward.1} parent=1 // pred_region
      %39 = dma.done [#allocation5], 128
    $region21: #{forward.1} parent=1 // pred_fallthru
      _
    %v41 = vld [vmem:[%s0] sm:$0xff]
    %v42 = vld [vmem:[%s0 + $0x8] sm:$0xff]
    %v43 = vld [vmem:[%s0 + $0x10] sm:$0xf]
    %v44 = vld [vmem:[%s0 + $0x14] sm:$0xff]
    %v45 = vld [vmem:[%s0 + $0x1c] sm:$0xff]
    %v46 = vld [vmem:[%s0 + $0x24] sm:$0xf]
    %v47 = vld [vmem:[#allocation2] sm:$0xff]
    %v48 = vld [vmem:[#allocation2 + $0x8] sm:$0xff]
    %v49 = vld [vmem:[#allocation2 + $0x10] sm:$0xff]
    %v50 = vld [vmem:[#allocation2 + $0x18] sm:$0xff]
    %v51 = vld [vmem:[#allocation2 + $0x20] sm:$0xff]
    %v52 = vld [vmem:[#allocation2 + $0x28] sm:$0xff]
    %v53 = vld [vmem:[#allocation2 + $0x30] sm:$0xff]
    %v54 = vld [vmem:[#allocation2 + $0x38] sm:$0xff]
    %v55 = vld [vmem:[#allocation2 + $0x40] sm:$0xff]
    %v56 = vld [vmem:[#allocation2 + $0x48] sm:$0xff]
    %v57 = vld [vmem:[#allocation2 + $0x50] sm:$0xff]
    %v58 = vld [vmem:[#allocation2 + $0x58] sm:$0xff]
    %v59 = vld [vmem:[#allocation2 + $0x60] sm:$0xff]
    %v60 = vld [vmem:[#allocation2 + $0x68] sm:$0xff]
    %v61 = vld [vmem:[#allocation2 + $0x70] sm:$0xff]
    %v62 = vld [vmem:[#allocation2 + $0x78] sm:$0xff]
    %v63 = vld [vmem:[#allocation2 + $0x80] sm:$0xff]
    %v64 = vld [vmem:[#allocation2 + $0x88] sm:$0xff]
    %v65 = vld [vmem:[#allocation2 + $0x90] sm:$0xff]
    %v66 = vld [vmem:[#allocation2 + $0x98] sm:$0xff]
    %v67 = vld [vmem:[#allocation2 + $0xa0] sm:$0xff]
    %v68 = vld [vmem:[#allocation2 + $0xa8] sm:$0xff]
    %v69 = vld [vmem:[#allocation2 + $0xb0] sm:$0xff]
    %v70 = vld [vmem:[#allocation2 + $0xb8] sm:$0xff]
    %v71 = vld [vmem:[#allocation2 + $0xc0] sm:$0xff]
    %v72 = vld [vmem:[#allocation2 + $0xc8] sm:$0xff]
    %v73 = vld [vmem:[#allocation2 + $0xd0] sm:$0xff]
    %v74 = vld [vmem:[#allocation2 + $0xd8] sm:$0xff]
    %v75 = vld [vmem:[#allocation2 + $0xe0] sm:$0xff]
    %v76 = vld [vmem:[#allocation2 + $0xe8] sm:$0xff]
    %v77 = vld [vmem:[#allocation2 + $0xf0] sm:$0xff]
    %v78 = vld [vmem:[#allocation2 + $0xf8] sm:$0xff]
    %v79 = vld [vmem:[#allocation2 + $0x100] sm:$0xff]
    %v80 = vld [vmem:[#allocation2 + $0x108] sm:$0xff]
    %v81 = vld [vmem:[#allocation2 + $0x110] sm:$0xff]
    %v82 = vld [vmem:[#allocation2 + $0x118] sm:$0xff]
    %v83 = vld [vmem:[#allocation2 + $0x120] sm:$0xff]
    %v84 = vld [vmem:[#allocation2 + $0x128] sm:$0xff]
    %v85 = vld [vmem:[#allocation2 + $0x130] sm:$0xff]
    %v86 = vld [vmem:[#allocation2 + $0x138] sm:$0xff]
    %v87 = vld [vmem:[#allocation2 + $0x140] sm:$0xff]
    %v88 = vld [vmem:[#allocation2 + $0x148] sm:$0xff]
    %v89 = vld [vmem:[#allocation2 + $0x150] sm:$0xff]
    %v90 = vld [vmem:[#allocation2 + $0x158] sm:$0xff]
    %v91 = vld [vmem:[#allocation2 + $0x160] sm:$0xff]
    %v92 = vld [vmem:[#allocation2 + $0x168] sm:$0xff]
    %v93 = vld [vmem:[#allocation2 + $0x170] sm:$0xff]
    %v94 = vld [vmem:[#allocation2 + $0x178] sm:$0xff]
    %v95 = vld [vmem:[#allocation2 + $0x180] sm:$0xff]
    %v96 = vld [vmem:[#allocation2 + $0x188] sm:$0xff]
    %v97 = vld [vmem:[#allocation2 + $0x190] sm:$0xff]
    %v98 = vld [vmem:[#allocation2 + $0x198] sm:$0xff]
    %v99 = vld [vmem:[#allocation2 + $0x1a0] sm:$0xff]
    %v100 = vld [vmem:[#allocation2 + $0x1a8] sm:$0xff]
    %v101 = vld [vmem:[#allocation2 + $0x1b0] sm:$0xff]
    %v102 = vld [vmem:[#allocation2 + $0x1b8] sm:$0xff]
    %v103 = vld [vmem:[#allocation2 + $0x1c0] sm:$0xff]
    %v104 = vld [vmem:[#allocation2 + $0x1c8] sm:$0xff]
    %v105 = vld [vmem:[#allocation2 + $0x1d0] sm:$0xff]
    %v106 = vld [vmem:[#allocation2 + $0x1d8] sm:$0xff]
    %v107 = vld [vmem:[#allocation2 + $0x1e0] sm:$0xff]
    %v108 = vld [vmem:[#allocation2 + $0x1e8] sm:$0xff]
    %v109 = vld [vmem:[#allocation2 + $0x1f0] sm:$0xff]
    %v110 = vld [vmem:[#allocation2 + $0x1f8] sm:$0xff]
    %v111 = vld [vmem:[#allocation2 + $0x200] sm:$0xff]
    %v112 = vld [vmem:[#allocation2 + $0x208] sm:$0xff]
    %v113 = vld [vmem:[#allocation2 + $0x210] sm:$0xff]
    %v114 = vld [vmem:[#allocation2 + $0x218] sm:$0xff]
    %v115 = vld [vmem:[#allocation2 + $0x220] sm:$0xff]
    %v116 = vld [vmem:[#allocation2 + $0x228] sm:$0xff]
    %v117 = vld [vmem:[#allocation2 + $0x230] sm:$0xff]
    %v118 = vld [vmem:[#allocation2 + $0x238] sm:$0xff]
    %v119 = vld [vmem:[#allocation2 + $0x240] sm:$0xff]
    %v120 = vld [vmem:[#allocation2 + $0x248] sm:$0xff]
    %v121 = vld [vmem:[#allocation2 + $0x250] sm:$0xff]
    %v122 = vld [vmem:[#allocation2 + $0x258] sm:$0xff]
    %v123 = vld [vmem:[#allocation2 + $0x260] sm:$0xff]
    %v124 = vld [vmem:[#allocation2 + $0x268] sm:$0xff]
    %v125 = vld [vmem:[#allocation2 + $0x270] sm:$0xff]
    %v126 = vld [vmem:[#allocation2 + $0x278] sm:$0xff]
    %v127 = vld [vmem:[#allocation2 + $0x280] sm:$0xff]
    %v128 = vld [vmem:[#allocation2 + $0x288] sm:$0xff]
    %v129 = vld [vmem:[#allocation2 + $0x290] sm:$0xff]
    %v130 = vld [vmem:[#allocation2 + $0x298] sm:$0xff]
    %v131 = vld [vmem:[#allocation2 + $0x2a0] sm:$0xff]
    %v132 = vld [vmem:[#allocation2 + $0x2a8] sm:$0xff]
    %v133 = vld [vmem:[#allocation2 + $0x2b0] sm:$0xff]
    %v134 = vld [vmem:[#allocation2 + $0x2b8] sm:$0xff]
    %v135 = vld [vmem:[#allocation2 + $0x2c0] sm:$0xff]
    %v136 = vld [vmem:[#allocation2 + $0x2c8] sm:$0xff]
    %v137 = vld [vmem:[#allocation2 + $0x2d0] sm:$0xff]
    %v138 = vld [vmem:[#allocation2 + $0x2d8] sm:$0xff]
    %v139 = vld [vmem:[#allocation2 + $0x2e0] sm:$0xff]
    %v140 = vld [vmem:[#allocation2 + $0x2e8] sm:$0xff]
    %v141 = vld [vmem:[#allocation2 + $0x2f0] sm:$0xff]
    %v142 = vld [vmem:[#allocation2 + $0x2f8] sm:$0xff]
    %v143 = vld [vmem:[#allocation2 + $0x300] sm:$0xff]
    %v144 = vld [vmem:[#allocation2 + $0x308] sm:$0xff]
    %v145 = vld [vmem:[#allocation2 + $0x310] sm:$0xff]
    %v146 = vld [vmem:[#allocation2 + $0x318] sm:$0xff]
    %v147 = vld [vmem:[#allocation2 + $0x320] sm:$0xff]
    %v148 = vld [vmem:[#allocation2 + $0x328] sm:$0xff]
    %v149 = vld [vmem:[#allocation2 + $0x330] sm:$0xff]
    %v150 = vld [vmem:[#allocation2 + $0x338] sm:$0xff]
    %v151 = vld [vmem:[#allocation2 + $0x340] sm:$0xff]
    %v152 = vld [vmem:[#allocation2 + $0x348] sm:$0xff]
    %v153 = vld [vmem:[#allocation2 + $0x350] sm:$0xff]
    %v154 = vld [vmem:[#allocation2 + $0x358] sm:$0xff]
    %v155 = vld [vmem:[#allocation2 + $0x360] sm:$0xff]
    %v156 = vld [vmem:[#allocation2 + $0x368] sm:$0xff]
    %v157 = vld [vmem:[#allocation2 + $0x370] sm:$0xff]
    %v158 = vld [vmem:[#allocation2 + $0x378] sm:$0xff]
    %v159 = vld [vmem:[#allocation2 + $0x380] sm:$0xff]
    %v160 = vld [vmem:[#allocation2 + $0x388] sm:$0xff]
    %v161 = vld [vmem:[#allocation2 + $0x390] sm:$0xff]
    %v162 = vld [vmem:[#allocation2 + $0x398] sm:$0xff]
    %v163 = vld [vmem:[#allocation2 + $0x3a0] sm:$0xff]
    %v164 = vld [vmem:[#allocation2 + $0x3a8] sm:$0xff]
    %v165 = vld [vmem:[#allocation2 + $0x3b0] sm:$0xff]
    %v166 = vld [vmem:[#allocation2 + $0x3b8] sm:$0xff]
    %v167 = vld [vmem:[#allocation2 + $0x3c0] sm:$0xff]
    %v168 = vld [vmem:[#allocation2 + $0x3c8] sm:$0xff]
    %v169 = vld [vmem:[#allocation2 + $0x3d0] sm:$0xff]
    %v170 = vld [vmem:[#allocation2 + $0x3d8] sm:$0xff]
    %v171 = vld [vmem:[#allocation2 + $0x3e0] sm:$0xff]
    %v172 = vld [vmem:[#allocation2 + $0x3e8] sm:$0xff]
    %v173 = vld [vmem:[#allocation2 + $0x3f0] sm:$0xff]
    %v174 = vld [vmem:[#allocation2 + $0x3f8] sm:$0xff]
    %v175 = vld [vmem:[#allocation2 + $0x400] sm:$0xff]
    %v176 = vld [vmem:[#allocation2 + $0x408] sm:$0xff]
    %v177 = vld [vmem:[#allocation2 + $0x410] sm:$0xff]
    %v178 = vld [vmem:[#allocation2 + $0x418] sm:$0xff]
    %v179 = vld [vmem:[#allocation2 + $0x420] sm:$0xff]
    %v180 = vld [vmem:[#allocation2 + $0x428] sm:$0xff]
    %v181 = vld [vmem:[#allocation2 + $0x430] sm:$0xff]
    %v182 = vld [vmem:[#allocation2 + $0x438] sm:$0xff]
    %v183 = vld [vmem:[#allocation2 + $0x440] sm:$0xff]
    %v184 = vld [vmem:[#allocation2 + $0x448] sm:$0xff]
    %v185 = vld [vmem:[#allocation2 + $0x450] sm:$0xff]
    %v186 = vld [vmem:[#allocation2 + $0x458] sm:$0xff]
    %v187 = vld [vmem:[#allocation2 + $0x460] sm:$0xff]
    %v188 = vld [vmem:[#allocation2 + $0x468] sm:$0xff]
    %v189 = vld [vmem:[#allocation2 + $0x470] sm:$0xff]
    %v190 = vld [vmem:[#allocation2 + $0x478] sm:$0xff]
    %v191 = vld [vmem:[#allocation2 + $0x480] sm:$0xff]
    %v192 = vld [vmem:[#allocation2 + $0x488] sm:$0xff]
    %v193 = vld [vmem:[#allocation2 + $0x490] sm:$0xff]
    %v194 = vld [vmem:[#allocation2 + $0x498] sm:$0xff]
    %v195 = vld [vmem:[#allocation2 + $0x4a0] sm:$0xff]
    %v196 = vld [vmem:[#allocation2 + $0x4a8] sm:$0xff]
    %v197 = vld [vmem:[#allocation2 + $0x4b0] sm:$0xff]
    %v198 = vld [vmem:[#allocation2 + $0x4b8] sm:$0xff]
    %v199 = vld [vmem:[#allocation2 + $0x4c0] sm:$0xff]
    %v200 = vld [vmem:[#allocation2 + $0x4c8] sm:$0xff]
    %v201 = vld [vmem:[#allocation2 + $0x4d0] sm:$0xff]
    %v202 = vld [vmem:[#allocation2 + $0x4d8] sm:$0xff]
    %v203 = vld [vmem:[#allocation2 + $0x4e0] sm:$0xff]
    %v204 = vld [vmem:[#allocation2 + $0x4e8] sm:$0xff]
    %v205 = vld [vmem:[#allocation2 + $0x4f0] sm:$0xff]
    %v206 = vld [vmem:[#allocation2 + $0x4f8] sm:$0xff]
    %v207 = vld [vmem:[#allocation2 + $0x500] sm:$0xff]
    %v208 = vld [vmem:[#allocation2 + $0x508] sm:$0xff]
    %v209 = vld [vmem:[#allocation2 + $0x510] sm:$0xff]
    %v210 = vld [vmem:[#allocation2 + $0x518] sm:$0xff]
    %v211 = vld [vmem:[#allocation2 + $0x520] sm:$0xff]
    %v212 = vld [vmem:[#allocation2 + $0x528] sm:$0xff]
    %v213 = vld [vmem:[#allocation2 + $0x530] sm:$0xff]
    %v214 = vld [vmem:[#allocation2 + $0x538] sm:$0xff]
    %v215 = vld [vmem:[#allocation2 + $0x540] sm:$0xff]
    %v216 = vld [vmem:[#allocation2 + $0x548] sm:$0xff]
    %v217 = vld [vmem:[#allocation2 + $0x550] sm:$0xff]
    %v218 = vld [vmem:[#allocation2 + $0x558] sm:$0xff]
    %v219 = vld [vmem:[#allocation2 + $0x560] sm:$0xff]
    %v220 = vld [vmem:[#allocation2 + $0x568] sm:$0xff]
    %v221 = vld [vmem:[#allocation2 + $0x570] sm:$0xff]
    %v222 = vld [vmem:[#allocation2 + $0x578] sm:$0xff]
    %v223 = vld [vmem:[#allocation2 + $0x580] sm:$0xff]
    %v224 = vld [vmem:[#allocation2 + $0x588] sm:$0xff]
    %v225 = vld [vmem:[#allocation2 + $0x590] sm:$0xff]
    %v226 = vld [vmem:[#allocation2 + $0x598] sm:$0xff]
    %v227 = vld [vmem:[#allocation2 + $0x5a0] sm:$0xff]
    %v228 = vld [vmem:[#allocation2 + $0x5a8] sm:$0xff]
    %v229 = vld [vmem:[#allocation2 + $0x5b0] sm:$0xff]
    %v230 = vld [vmem:[#allocation2 + $0x5b8] sm:$0xff]
    %v231 = vld [vmem:[#allocation2 + $0x5c0] sm:$0xff]
    %v232 = vld [vmem:[#allocation2 + $0x5c8] sm:$0xff]
    %v233 = vld [vmem:[#allocation2 + $0x5d0] sm:$0xff]
    %v234 = vld [vmem:[#allocation2 + $0x5d8] sm:$0xff]
    %v235 = vld [vmem:[#allocation2 + $0x5e0] sm:$0xff]
    %v236 = vld [vmem:[#allocation2 + $0x5e8] sm:$0xff]
    %v237 = vld [vmem:[#allocation2 + $0x5f0] sm:$0xff]
    %v238 = vld [vmem:[#allocation2 + $0x5f8] sm:$0xff]
    %v239 = vld [vmem:[#allocation2 + $0x600] sm:$0xff]
    %v240 = vld [vmem:[#allocation2 + $0x608] sm:$0xff]
    %v241 = vld [vmem:[#allocation2 + $0x610] sm:$0xff]
    %v242 = vld [vmem:[#allocation2 + $0x618] sm:$0xff]
    %v243 = vld [vmem:[#allocation2 + $0x620] sm:$0xff]
    %v244 = vld [vmem:[#allocation2 + $0x628] sm:$0xff]
    %v245 = vld [vmem:[#allocation2 + $0x630] sm:$0xff]
    %v246 = vld [vmem:[#allocation2 + $0x638] sm:$0xff]
    %v247 = vld [vmem:[#allocation2 + $0x640] sm:$0xff]
    %v248 = vld [vmem:[#allocation2 + $0x648] sm:$0xff]
    %v249 = vld [vmem:[#allocation2 + $0x650] sm:$0xff]
    %v250 = vld [vmem:[#allocation2 + $0x658] sm:$0xff]
    %v251 = vld [vmem:[#allocation2 + $0x660] sm:$0xff]
    %v252 = vld [vmem:[#allocation2 + $0x668] sm:$0xff]
    %v253 = vld [vmem:[#allocation2 + $0x670] sm:$0xff]
    %v254 = vld [vmem:[#allocation2 + $0x678] sm:$0xff]
    %v255 = vld [vmem:[#allocation2 + $0x680] sm:$0xff]
    %v256 = vld [vmem:[#allocation2 + $0x688] sm:$0xff]
    %v257 = vld [vmem:[#allocation2 + $0x690] sm:$0xff]
    %v258 = vld [vmem:[#allocation2 + $0x698] sm:$0xff]
    %v259 = vld [vmem:[#allocation2 + $0x6a0] sm:$0xff]
    %v260 = vld [vmem:[#allocation2 + $0x6a8] sm:$0xff]
    %v261 = vld [vmem:[#allocation2 + $0x6b0] sm:$0xff]
    %v262 = vld [vmem:[#allocation2 + $0x6b8] sm:$0xff]
    %v263 = vld [vmem:[#allocation2 + $0x6c0] sm:$0xff]
    %v264 = vld [vmem:[#allocation2 + $0x6c8] sm:$0xff]
    %v265 = vld [vmem:[#allocation2 + $0x6d0] sm:$0xff]
    %v266 = vld [vmem:[#allocation2 + $0x6d8] sm:$0xff]
    %v267 = vld [vmem:[#allocation2 + $0x6e0] sm:$0xff]
    %v268 = vld [vmem:[#allocation2 + $0x6e8] sm:$0xff]
    %v269 = vld [vmem:[#allocation2 + $0x6f0] sm:$0xff]
    %v270 = vld [vmem:[#allocation2 + $0x6f8] sm:$0xff]
    %v271 = vld [vmem:[#allocation2 + $0x700] sm:$0xff]
    %v272 = vld [vmem:[#allocation2 + $0x708] sm:$0xff]
    %v273 = vld [vmem:[#allocation2 + $0x710] sm:$0xff]
    %v274 = vld [vmem:[#allocation2 + $0x718] sm:$0xff]
    %v275 = vld [vmem:[#allocation2 + $0x720] sm:$0xff]
    %v276 = vld [vmem:[#allocation2 + $0x728] sm:$0xff]
    %v277 = vld [vmem:[#allocation2 + $0x730] sm:$0xff]
    %v278 = vld [vmem:[#allocation2 + $0x738] sm:$0xff]
    %v279 = vld [vmem:[#allocation2 + $0x740] sm:$0xff]
    %v280 = vld [vmem:[#allocation2 + $0x748] sm:$0xff]
    %v281 = vld [vmem:[#allocation2 + $0x750] sm:$0xff]
    %v282 = vld [vmem:[#allocation2 + $0x758] sm:$0xff]
    %v283 = vld [vmem:[#allocation2 + $0x760] sm:$0xff]
    %v284 = vld [vmem:[#allocation2 + $0x768] sm:$0xff]
    %v285 = vld [vmem:[#allocation2 + $0x770] sm:$0xff]
    %v286 = vld [vmem:[#allocation2 + $0x778] sm:$0xff]
    %v287 = vld [vmem:[#allocation2 + $0x780] sm:$0xff]
    %v288 = vld [vmem:[#allocation2 + $0x788] sm:$0xff]
    %v289 = vld [vmem:[#allocation2 + $0x790] sm:$0xff]
    %v290 = vld [vmem:[#allocation2 + $0x798] sm:$0xff]
    %v291 = vld [vmem:[#allocation2 + $0x7a0] sm:$0xff]
    %v292 = vld [vmem:[#allocation2 + $0x7a8] sm:$0xff]
    %v293 = vld [vmem:[#allocation2 + $0x7b0] sm:$0xff]
    %v294 = vld [vmem:[#allocation2 + $0x7b8] sm:$0xff]
    %v295 = vld [vmem:[#allocation2 + $0x7c0] sm:$0xff]
    %v296 = vld [vmem:[#allocation2 + $0x7c8] sm:$0xff]
    %v297 = vld [vmem:[#allocation2 + $0x7d0] sm:$0xff]
    %v298 = vld [vmem:[#allocation2 + $0x7d8] sm:$0xff]
    %v299 = vld [vmem:[#allocation2 + $0x7e0] sm:$0xff]
    %v300 = vld [vmem:[#allocation2 + $0x7e8] sm:$0xff]
    %v301 = vld [vmem:[#allocation2 + $0x7f0] sm:$0xff]
    %v302 = vld [vmem:[#allocation2 + $0x7f8] sm:$0xff]
    %v303 = vld [vmem:[#allocation2 + $0x800] sm:$0xff]
    %v304 = vld [vmem:[#allocation2 + $0x808] sm:$0xff]
    %v305 = vld [vmem:[#allocation2 + $0x810] sm:$0xff]
    %v306 = vld [vmem:[#allocation2 + $0x818] sm:$0xff]
    %v307 = vld [vmem:[#allocation2 + $0x820] sm:$0xff]
    %v308 = vld [vmem:[#allocation2 + $0x828] sm:$0xff]
    %v309 = vld [vmem:[#allocation2 + $0x830] sm:$0xff]
    %v310 = vld [vmem:[#allocation2 + $0x838] sm:$0xff]
    %v311 = vld [vmem:[#allocation2 + $0x840] sm:$0xff]
    %v312 = vld [vmem:[#allocation2 + $0x848] sm:$0xff]
    %v313 = vld [vmem:[#allocation2 + $0x850] sm:$0xff]
    %v314 = vld [vmem:[#allocation2 + $0x858] sm:$0xff]
    %v315 = vld [vmem:[#allocation2 + $0x860] sm:$0xff]
    %v316 = vld [vmem:[#allocation2 + $0x868] sm:$0xff]
    %v317 = vld [vmem:[#allocation2 + $0x870] sm:$0xff]
    %v318 = vld [vmem:[#allocation2 + $0x878] sm:$0xff]
    %v319 = vld [vmem:[#allocation2 + $0x880] sm:$0xff]
    %v320 = vld [vmem:[#allocation2 + $0x888] sm:$0xff]
    %v321 = vld [vmem:[#allocation2 + $0x890] sm:$0xff]
    %v322 = vld [vmem:[#allocation2 + $0x898] sm:$0xff]
    %v323 = vld [vmem:[#allocation2 + $0x8a0] sm:$0xff]
    %v324 = vld [vmem:[#allocation2 + $0x8a8] sm:$0xff]
    %v325 = vld [vmem:[#allocation2 + $0x8b0] sm:$0xff]
    %v326 = vld [vmem:[#allocation2 + $0x8b8] sm:$0xff]
    %v327 = vld [vmem:[#allocation2 + $0x8c0] sm:$0xff]
    %v328 = vld [vmem:[#allocation2 + $0x8c8] sm:$0xff]
    %v329 = vld [vmem:[#allocation2 + $0x8d0] sm:$0xff]
    %v330 = vld [vmem:[#allocation2 + $0x8d8] sm:$0xff]
    %v331 = vld [vmem:[#allocation2 + $0x8e0] sm:$0xff]
    %v332 = vld [vmem:[#allocation2 + $0x8e8] sm:$0xff]
    %v333 = vld [vmem:[#allocation2 + $0x8f0] sm:$0xff]
    %v334 = vld [vmem:[#allocation2 + $0x8f8] sm:$0xff]
    %v335 = vld [vmem:[#allocation2 + $0x900] sm:$0xff]
    %v336 = vld [vmem:[#allocation2 + $0x908] sm:$0xff]
    %v337 = vld [vmem:[#allocation2 + $0x910] sm:$0xff]
    %v338 = vld [vmem:[#allocation2 + $0x918] sm:$0xff]
    %v339 = vld [vmem:[#allocation2 + $0x920] sm:$0xff]
    %v340 = vld [vmem:[#allocation2 + $0x928] sm:$0xff]
    %v341 = vld [vmem:[#allocation2 + $0x930] sm:$0xff]
    %v342 = vld [vmem:[#allocation2 + $0x938] sm:$0xff]
    %v343 = vld [vmem:[#allocation2 + $0x940] sm:$0xff]
    %v344 = vld [vmem:[#allocation2 + $0x948] sm:$0xff]
    %v345 = vld [vmem:[#allocation2 + $0x950] sm:$0xff]
    %v346 = vld [vmem:[#allocation2 + $0x958] sm:$0xff]
    %v347 = vld [vmem:[#allocation2 + $0x960] sm:$0xff]
    %v348 = vld [vmem:[#allocation2 + $0x968] sm:$0xff]
    %v349 = vld [vmem:[#allocation2 + $0x970] sm:$0xff]
    %v350 = vld [vmem:[#allocation2 + $0x978] sm:$0xff]
    %v351 = vld [vmem:[#allocation2 + $0x980] sm:$0xff]
    %v352 = vld [vmem:[#allocation2 + $0x988] sm:$0xff]
    %v353 = vld [vmem:[#allocation2 + $0x990] sm:$0xff]
    %v354 = vld [vmem:[#allocation2 + $0x998] sm:$0xff]
    %v355 = vld [vmem:[#allocation2 + $0x9a0] sm:$0xff]
    %v356 = vld [vmem:[#allocation2 + $0x9a8] sm:$0xff]
    %v357 = vld [vmem:[#allocation2 + $0x9b0] sm:$0xff]
    %v358 = vld [vmem:[#allocation2 + $0x9b8] sm:$0xff]
    %v359 = vld [vmem:[#allocation2 + $0x9c0] sm:$0xff]
    %v360 = vld [vmem:[#allocation2 + $0x9c8] sm:$0xff]
    %v361 = vld [vmem:[#allocation2 + $0x9d0] sm:$0xff]
    %v362 = vld [vmem:[#allocation2 + $0x9d8] sm:$0xff]
    %v363 = vld [vmem:[#allocation2 + $0x9e0] sm:$0xff]
    %v364 = vld [vmem:[#allocation2 + $0x9e8] sm:$0xff]
    %v365 = vld [vmem:[#allocation2 + $0x9f0] sm:$0xff]
    %v366 = vld [vmem:[#allocation2 + $0x9f8] sm:$0xff]
    %v367 = vld [vmem:[#allocation4] sm:$0xff]
    %v369 = vlaneseq
    %v370 = vshrl.u32 %v369, 7
    %v371 = vsub.s32 0, %v370
    %v372 = vrot.slane %v367, %v371
    %v373 = vlaneseq
    %v374 = vshrl.u32 %v373, 7
    %v375 = vsub.s32 1, %v374
    %v376 = vrot.slane %v367, %v375
    %v377 = vlaneseq
    %v378 = vshrl.u32 %v377, 7
    %v379 = vsub.s32 2, %v378
    %v380 = vrot.slane %v367, %v379
    %v381 = vlaneseq
    %v382 = vshrl.u32 %v381, 7
    %v383 = vsub.s32 3, %v382
    %v384 = vrot.slane %v367, %v383
    %v385 = vlaneseq
    %v386 = vshrl.u32 %v385, 7
    %v387 = vsub.s32 4, %v386
    %v388 = vrot.slane %v367, %v387
    %v389 = vlaneseq
    %v390 = vshrl.u32 %v389, 7
    %v391 = vsub.s32 5, %v390
    %v392 = vrot.slane %v367, %v391
    %v393 = vlaneseq
    %v394 = vshrl.u32 %v393, 7
    %v395 = vsub.s32 6, %v394
    %v396 = vrot.slane %v367, %v395
    %v397 = vlaneseq
    %v398 = vshrl.u32 %v397, 7
    %v399 = vsub.s32 7, %v398
    %v400 = vrot.slane %v367, %v399
    %v415 = vunpack.c.l.b16 %v41
    %v416 = vunpack.c.h.b16 %v41
    %v417 = vunpack.c.l.b16 %v42
    %v418 = vunpack.c.h.b16 %v42
    %v419 = vunpack.c.l.b16 %v43
    %v420 = vunpack.c.l.b16 %v44
    %v421 = vunpack.c.h.b16 %v44
    %v422 = vunpack.c.l.b16 %v45
    %v423 = vunpack.c.h.b16 %v45
    %v424 = vunpack.c.l.b16 %v46
    %v425 = vpack.c.b16 %v420, %v415
    %v426 = vpack.c.b16 %v421, %v416
    %v427 = vpack.c.b16 %v422, %v417
    %v428 = vpack.c.b16 %v423, %v418
    %v429 = vpack.c.b16 %v424, %v419
    %v755 = vunpack.c.l.b16 %v47
    %v756 = vunpack.c.h.b16 %v47
    %v757 = vunpack.c.l.b16 %v48
    %v758 = vunpack.c.h.b16 %v48
    %v759 = vunpack.c.l.b16 %v49
    %v760 = vunpack.c.h.b16 %v49
    %v761 = vunpack.c.l.b16 %v50
    %v762 = vunpack.c.h.b16 %v50
    %v763 = vunpack.c.l.b16 %v51
    %v764 = vunpack.c.h.b16 %v51
    %v765 = vunpack.c.l.b16 %v52
    %v766 = vunpack.c.h.b16 %v52
    %v767 = vunpack.c.l.b16 %v53
    %v768 = vunpack.c.h.b16 %v53
    %v769 = vunpack.c.l.b16 %v54
    %v770 = vunpack.c.h.b16 %v54
    %v771 = vunpack.c.l.b16 %v55
    %v772 = vunpack.c.h.b16 %v55
    %v773 = vunpack.c.l.b16 %v56
    %v774 = vunpack.c.h.b16 %v56
    %v775 = vunpack.c.l.b16 %v57
    %v776 = vunpack.c.h.b16 %v57
    %v777 = vunpack.c.l.b16 %v58
    %v778 = vunpack.c.h.b16 %v58
    %v779 = vunpack.c.l.b16 %v59
    %v780 = vunpack.c.h.b16 %v59
    %v781 = vunpack.c.l.b16 %v60
    %v782 = vunpack.c.h.b16 %v60
    %v783 = vunpack.c.l.b16 %v61
    %v784 = vunpack.c.h.b16 %v61
    %v785 = vunpack.c.l.b16 %v62
    %v786 = vunpack.c.h.b16 %v62
    %v787 = vunpack.c.l.b16 %v63
    %v788 = vunpack.c.h.b16 %v63
    %v789 = vunpack.c.l.b16 %v64
    %v790 = vunpack.c.h.b16 %v64
    %v791 = vunpack.c.l.b16 %v65
    %v792 = vunpack.c.h.b16 %v65
    %v793 = vunpack.c.l.b16 %v66
    %v794 = vunpack.c.h.b16 %v66
    %v795 = vunpack.c.l.b16 %v67
    %v796 = vunpack.c.h.b16 %v67
    %v797 = vunpack.c.l.b16 %v68
    %v798 = vunpack.c.h.b16 %v68
    %v799 = vunpack.c.l.b16 %v69
    %v800 = vunpack.c.h.b16 %v69
    %v801 = vunpack.c.l.b16 %v70
    %v802 = vunpack.c.h.b16 %v70
    %v803 = vunpack.c.l.b16 %v71
    %v804 = vunpack.c.h.b16 %v71
    %v805 = vunpack.c.l.b16 %v72
    %v806 = vunpack.c.h.b16 %v72
    %v807 = vunpack.c.l.b16 %v73
    %v808 = vunpack.c.h.b16 %v73
    %v809 = vunpack.c.l.b16 %v74
    %v810 = vunpack.c.h.b16 %v74
    %v811 = vunpack.c.l.b16 %v75
    %v812 = vunpack.c.h.b16 %v75
    %v813 = vunpack.c.l.b16 %v76
    %v814 = vunpack.c.h.b16 %v76
    %v815 = vunpack.c.l.b16 %v77
    %v816 = vunpack.c.h.b16 %v77
    %v817 = vunpack.c.l.b16 %v78
    %v818 = vunpack.c.h.b16 %v78
    %v819 = vunpack.c.l.b16 %v79
    %v820 = vunpack.c.h.b16 %v79
    %v821 = vunpack.c.l.b16 %v80
    %v822 = vunpack.c.h.b16 %v80
    %v823 = vunpack.c.l.b16 %v81
    %v824 = vunpack.c.h.b16 %v81
    %v825 = vunpack.c.l.b16 %v82
    %v826 = vunpack.c.h.b16 %v82
    %v827 = vunpack.c.l.b16 %v83
    %v828 = vunpack.c.h.b16 %v83
    %v829 = vunpack.c.l.b16 %v84
    %v830 = vunpack.c.h.b16 %v84
    %v831 = vunpack.c.l.b16 %v85
    %v832 = vunpack.c.h.b16 %v85
    %v833 = vunpack.c.l.b16 %v86
    %v834 = vunpack.c.h.b16 %v86
    %v835 = vunpack.c.l.b16 %v87
    %v836 = vunpack.c.h.b16 %v87
    %v837 = vunpack.c.l.b16 %v88
    %v838 = vunpack.c.h.b16 %v88
    %v839 = vunpack.c.l.b16 %v89
    %v840 = vunpack.c.h.b16 %v89
    %v841 = vunpack.c.l.b16 %v90
    %v842 = vunpack.c.h.b16 %v90
    %v843 = vunpack.c.l.b16 %v91
    %v844 = vunpack.c.h.b16 %v91
    %v845 = vunpack.c.l.b16 %v92
    %v846 = vunpack.c.h.b16 %v92
    %v847 = vunpack.c.l.b16 %v93
    %v848 = vunpack.c.h.b16 %v93
    %v849 = vunpack.c.l.b16 %v94
    %v850 = vunpack.c.h.b16 %v94
    %v851 = vunpack.c.l.b16 %v95
    %v852 = vunpack.c.h.b16 %v95
    %v853 = vunpack.c.l.b16 %v96
    %v854 = vunpack.c.h.b16 %v96
    %v855 = vunpack.c.l.b16 %v97
    %v856 = vunpack.c.h.b16 %v97
    %v857 = vunpack.c.l.b16 %v98
    %v858 = vunpack.c.h.b16 %v98
    %v859 = vunpack.c.l.b16 %v99
    %v860 = vunpack.c.h.b16 %v99
    %v861 = vunpack.c.l.b16 %v100
    %v862 = vunpack.c.h.b16 %v100
    %v863 = vunpack.c.l.b16 %v101
    %v864 = vunpack.c.h.b16 %v101
    %v865 = vunpack.c.l.b16 %v102
    %v866 = vunpack.c.h.b16 %v102
    %v867 = vunpack.c.l.b16 %v103
    %v868 = vunpack.c.h.b16 %v103
    %v869 = vunpack.c.l.b16 %v104
    %v870 = vunpack.c.h.b16 %v104
    %v871 = vunpack.c.l.b16 %v105
    %v872 = vunpack.c.h.b16 %v105
    %v873 = vunpack.c.l.b16 %v106
    %v874 = vunpack.c.h.b16 %v106
    %v875 = vunpack.c.l.b16 %v107
    %v876 = vunpack.c.h.b16 %v107
    %v877 = vunpack.c.l.b16 %v108
    %v878 = vunpack.c.h.b16 %v108
    %v879 = vunpack.c.l.b16 %v109
    %v880 = vunpack.c.h.b16 %v109
    %v881 = vunpack.c.l.b16 %v110
    %v882 = vunpack.c.h.b16 %v110
    %v883 = vunpack.c.l.b16 %v111
    %v884 = vunpack.c.h.b16 %v111
    %v885 = vunpack.c.l.b16 %v112
    %v886 = vunpack.c.h.b16 %v112
    %v887 = vunpack.c.l.b16 %v113
    %v888 = vunpack.c.h.b16 %v113
    %v889 = vunpack.c.l.b16 %v114
    %v890 = vunpack.c.h.b16 %v114
    %v891 = vunpack.c.l.b16 %v115
    %v892 = vunpack.c.h.b16 %v115
    %v893 = vunpack.c.l.b16 %v116
    %v894 = vunpack.c.h.b16 %v116
    %v895 = vunpack.c.l.b16 %v117
    %v896 = vunpack.c.h.b16 %v117
    %v897 = vunpack.c.l.b16 %v118
    %v898 = vunpack.c.h.b16 %v118
    %v899 = vunpack.c.l.b16 %v119
    %v900 = vunpack.c.h.b16 %v119
    %v901 = vunpack.c.l.b16 %v120
    %v902 = vunpack.c.h.b16 %v120
    %v903 = vunpack.c.l.b16 %v121
    %v904 = vunpack.c.h.b16 %v121
    %v905 = vunpack.c.l.b16 %v122
    %v906 = vunpack.c.h.b16 %v122
    %v907 = vunpack.c.l.b16 %v123
    %v908 = vunpack.c.h.b16 %v123
    %v909 = vunpack.c.l.b16 %v124
    %v910 = vunpack.c.h.b16 %v124
    %v911 = vunpack.c.l.b16 %v125
    %v912 = vunpack.c.h.b16 %v125
    %v913 = vunpack.c.l.b16 %v126
    %v914 = vunpack.c.h.b16 %v126
    %v915 = vunpack.c.l.b16 %v127
    %v916 = vunpack.c.h.b16 %v127
    %v917 = vunpack.c.l.b16 %v128
    %v918 = vunpack.c.h.b16 %v128
    %v919 = vunpack.c.l.b16 %v129
    %v920 = vunpack.c.h.b16 %v129
    %v921 = vunpack.c.l.b16 %v130
    %v922 = vunpack.c.h.b16 %v130
    %v923 = vunpack.c.l.b16 %v131
    %v924 = vunpack.c.h.b16 %v131
    %v925 = vunpack.c.l.b16 %v132
    %v926 = vunpack.c.h.b16 %v132
    %v927 = vunpack.c.l.b16 %v133
    %v928 = vunpack.c.h.b16 %v133
    %v929 = vunpack.c.l.b16 %v134
    %v930 = vunpack.c.h.b16 %v134
    %v931 = vunpack.c.l.b16 %v135
    %v932 = vunpack.c.h.b16 %v135
    %v933 = vunpack.c.l.b16 %v136
    %v934 = vunpack.c.h.b16 %v136
    %v935 = vunpack.c.l.b16 %v137
    %v936 = vunpack.c.h.b16 %v137
    %v937 = vunpack.c.l.b16 %v138
    %v938 = vunpack.c.h.b16 %v138
    %v939 = vunpack.c.l.b16 %v139
    %v940 = vunpack.c.h.b16 %v139
    %v941 = vunpack.c.l.b16 %v140
    %v942 = vunpack.c.h.b16 %v140
    %v943 = vunpack.c.l.b16 %v141
    %v944 = vunpack.c.h.b16 %v141
    %v945 = vunpack.c.l.b16 %v142
    %v946 = vunpack.c.h.b16 %v142
    %v947 = vunpack.c.l.b16 %v143
    %v948 = vunpack.c.h.b16 %v143
    %v949 = vunpack.c.l.b16 %v144
    %v950 = vunpack.c.h.b16 %v144
    %v951 = vunpack.c.l.b16 %v145
    %v952 = vunpack.c.h.b16 %v145
    %v953 = vunpack.c.l.b16 %v146
    %v954 = vunpack.c.h.b16 %v146
    %v955 = vunpack.c.l.b16 %v147
    %v956 = vunpack.c.h.b16 %v147
    %v957 = vunpack.c.l.b16 %v148
    %v958 = vunpack.c.h.b16 %v148
    %v959 = vunpack.c.l.b16 %v149
    %v960 = vunpack.c.h.b16 %v149
    %v961 = vunpack.c.l.b16 %v150
    %v962 = vunpack.c.h.b16 %v150
    %v963 = vunpack.c.l.b16 %v151
    %v964 = vunpack.c.h.b16 %v151
    %v965 = vunpack.c.l.b16 %v152
    %v966 = vunpack.c.h.b16 %v152
    %v967 = vunpack.c.l.b16 %v153
    %v968 = vunpack.c.h.b16 %v153
    %v969 = vunpack.c.l.b16 %v154
    %v970 = vunpack.c.h.b16 %v154
    %v971 = vunpack.c.l.b16 %v155
    %v972 = vunpack.c.h.b16 %v155
    %v973 = vunpack.c.l.b16 %v156
    %v974 = vunpack.c.h.b16 %v156
    %v975 = vunpack.c.l.b16 %v157
    %v976 = vunpack.c.h.b16 %v157
    %v977 = vunpack.c.l.b16 %v158
    %v978 = vunpack.c.h.b16 %v158
    %v979 = vunpack.c.l.b16 %v159
    %v980 = vunpack.c.h.b16 %v159
    %v981 = vunpack.c.l.b16 %v160
    %v982 = vunpack.c.h.b16 %v160
    %v983 = vunpack.c.l.b16 %v161
    %v984 = vunpack.c.h.b16 %v161
    %v985 = vunpack.c.l.b16 %v162
    %v986 = vunpack.c.h.b16 %v162
    %v987 = vunpack.c.l.b16 %v163
    %v988 = vunpack.c.h.b16 %v163
    %v989 = vunpack.c.l.b16 %v164
    %v990 = vunpack.c.h.b16 %v164
    %v991 = vunpack.c.l.b16 %v165
    %v992 = vunpack.c.h.b16 %v165
    %v993 = vunpack.c.l.b16 %v166
    %v994 = vunpack.c.h.b16 %v166
    %v995 = vunpack.c.l.b16 %v167
    %v996 = vunpack.c.h.b16 %v167
    %v997 = vunpack.c.l.b16 %v168
    %v998 = vunpack.c.h.b16 %v168
    %v999 = vunpack.c.l.b16 %v169
    %v1000 = vunpack.c.h.b16 %v169
    %v1001 = vunpack.c.l.b16 %v170
    %v1002 = vunpack.c.h.b16 %v170
    %v1003 = vunpack.c.l.b16 %v171
    %v1004 = vunpack.c.h.b16 %v171
    %v1005 = vunpack.c.l.b16 %v172
    %v1006 = vunpack.c.h.b16 %v172
    %v1007 = vunpack.c.l.b16 %v173
    %v1008 = vunpack.c.h.b16 %v173
    %v1009 = vunpack.c.l.b16 %v174
    %v1010 = vunpack.c.h.b16 %v174
    %v1011 = vunpack.c.l.b16 %v175
    %v1012 = vunpack.c.h.b16 %v175
    %v1013 = vunpack.c.l.b16 %v176
    %v1014 = vunpack.c.h.b16 %v176
    %v1015 = vunpack.c.l.b16 %v177
    %v1016 = vunpack.c.h.b16 %v177
    %v1017 = vunpack.c.l.b16 %v178
    %v1018 = vunpack.c.h.b16 %v178
    %v1019 = vunpack.c.l.b16 %v179
    %v1020 = vunpack.c.h.b16 %v179
    %v1021 = vunpack.c.l.b16 %v180
    %v1022 = vunpack.c.h.b16 %v180
    %v1023 = vunpack.c.l.b16 %v181
    %v1024 = vunpack.c.h.b16 %v181
    %v1025 = vunpack.c.l.b16 %v182
    %v1026 = vunpack.c.h.b16 %v182
    %v1027 = vunpack.c.l.b16 %v183
    %v1028 = vunpack.c.h.b16 %v183
    %v1029 = vunpack.c.l.b16 %v184
    %v1030 = vunpack.c.h.b16 %v184
    %v1031 = vunpack.c.l.b16 %v185
    %v1032 = vunpack.c.h.b16 %v185
    %v1033 = vunpack.c.l.b16 %v186
    %v1034 = vunpack.c.h.b16 %v186
    %v1035 = vunpack.c.l.b16 %v187
    %v1036 = vunpack.c.h.b16 %v187
    %v1037 = vunpack.c.l.b16 %v188
    %v1038 = vunpack.c.h.b16 %v188
    %v1039 = vunpack.c.l.b16 %v189
    %v1040 = vunpack.c.h.b16 %v189
    %v1041 = vunpack.c.l.b16 %v190
    %v1042 = vunpack.c.h.b16 %v190
    %v1043 = vunpack.c.l.b16 %v191
    %v1044 = vunpack.c.h.b16 %v191
    %v1045 = vunpack.c.l.b16 %v192
    %v1046 = vunpack.c.h.b16 %v192
    %v1047 = vunpack.c.l.b16 %v193
    %v1048 = vunpack.c.h.b16 %v193
    %v1049 = vunpack.c.l.b16 %v194
    %v1050 = vunpack.c.h.b16 %v194
    %v1051 = vunpack.c.l.b16 %v195
    %v1052 = vunpack.c.h.b16 %v195
    %v1053 = vunpack.c.l.b16 %v196
    %v1054 = vunpack.c.h.b16 %v196
    %v1055 = vunpack.c.l.b16 %v197
    %v1056 = vunpack.c.h.b16 %v197
    %v1057 = vunpack.c.l.b16 %v198
    %v1058 = vunpack.c.h.b16 %v198
    %v1059 = vunpack.c.l.b16 %v199
    %v1060 = vunpack.c.h.b16 %v199
    %v1061 = vunpack.c.l.b16 %v200
    %v1062 = vunpack.c.h.b16 %v200
    %v1063 = vunpack.c.l.b16 %v201
    %v1064 = vunpack.c.h.b16 %v201
    %v1065 = vunpack.c.l.b16 %v202
    %v1066 = vunpack.c.h.b16 %v202
    %v1067 = vunpack.c.l.b16 %v203
    %v1068 = vunpack.c.h.b16 %v203
    %v1069 = vunpack.c.l.b16 %v204
    %v1070 = vunpack.c.h.b16 %v204
    %v1071 = vunpack.c.l.b16 %v205
    %v1072 = vunpack.c.h.b16 %v205
    %v1073 = vunpack.c.l.b16 %v206
    %v1074 = vunpack.c.h.b16 %v206
    %v1075 = vunpack.c.l.b16 %v207
    %v1076 = vunpack.c.h.b16 %v207
    %v1077 = vunpack.c.l.b16 %v208
    %v1078 = vunpack.c.h.b16 %v208
    %v1079 = vunpack.c.l.b16 %v209
    %v1080 = vunpack.c.h.b16 %v209
    %v1081 = vunpack.c.l.b16 %v210
    %v1082 = vunpack.c.h.b16 %v210
    %v1083 = vunpack.c.l.b16 %v211
    %v1084 = vunpack.c.h.b16 %v211
    %v1085 = vunpack.c.l.b16 %v212
    %v1086 = vunpack.c.h.b16 %v212
    %v1087 = vunpack.c.l.b16 %v213
    %v1088 = vunpack.c.h.b16 %v213
    %v1089 = vunpack.c.l.b16 %v214
    %v1090 = vunpack.c.h.b16 %v214
    %v1091 = vunpack.c.l.b16 %v215
    %v1092 = vunpack.c.h.b16 %v215
    %v1093 = vunpack.c.l.b16 %v216
    %v1094 = vunpack.c.h.b16 %v216
    %v1095 = vunpack.c.l.b16 %v217
    %v1096 = vunpack.c.h.b16 %v217
    %v1097 = vunpack.c.l.b16 %v218
    %v1098 = vunpack.c.h.b16 %v218
    %v1099 = vunpack.c.l.b16 %v219
    %v1100 = vunpack.c.h.b16 %v219
    %v1101 = vunpack.c.l.b16 %v220
    %v1102 = vunpack.c.h.b16 %v220
    %v1103 = vunpack.c.l.b16 %v221
    %v1104 = vunpack.c.h.b16 %v221
    %v1105 = vunpack.c.l.b16 %v222
    %v1106 = vunpack.c.h.b16 %v222
    %v1107 = vunpack.c.l.b16 %v223
    %v1108 = vunpack.c.h.b16 %v223
    %v1109 = vunpack.c.l.b16 %v224
    %v1110 = vunpack.c.h.b16 %v224
    %v1111 = vunpack.c.l.b16 %v225
    %v1112 = vunpack.c.h.b16 %v225
    %v1113 = vunpack.c.l.b16 %v226
    %v1114 = vunpack.c.h.b16 %v226
    %v1115 = vunpack.c.l.b16 %v227
    %v1116 = vunpack.c.h.b16 %v227
    %v1117 = vunpack.c.l.b16 %v228
    %v1118 = vunpack.c.h.b16 %v228
    %v1119 = vunpack.c.l.b16 %v229
    %v1120 = vunpack.c.h.b16 %v229
    %v1121 = vunpack.c.l.b16 %v230
    %v1122 = vunpack.c.h.b16 %v230
    %v1123 = vunpack.c.l.b16 %v231
    %v1124 = vunpack.c.h.b16 %v231
    %v1125 = vunpack.c.l.b16 %v232
    %v1126 = vunpack.c.h.b16 %v232
    %v1127 = vunpack.c.l.b16 %v233
    %v1128 = vunpack.c.h.b16 %v233
    %v1129 = vunpack.c.l.b16 %v234
    %v1130 = vunpack.c.h.b16 %v234
    %v1131 = vunpack.c.l.b16 %v235
    %v1132 = vunpack.c.h.b16 %v235
    %v1133 = vunpack.c.l.b16 %v236
    %v1134 = vunpack.c.h.b16 %v236
    %v1135 = vunpack.c.l.b16 %v237
    %v1136 = vunpack.c.h.b16 %v237
    %v1137 = vunpack.c.l.b16 %v238
    %v1138 = vunpack.c.h.b16 %v238
    %v1139 = vunpack.c.l.b16 %v239
    %v1140 = vunpack.c.h.b16 %v239
    %v1141 = vunpack.c.l.b16 %v240
    %v1142 = vunpack.c.h.b16 %v240
    %v1143 = vunpack.c.l.b16 %v241
    %v1144 = vunpack.c.h.b16 %v241
    %v1145 = vunpack.c.l.b16 %v242
    %v1146 = vunpack.c.h.b16 %v242
    %v1147 = vunpack.c.l.b16 %v243
    %v1148 = vunpack.c.h.b16 %v243
    %v1149 = vunpack.c.l.b16 %v244
    %v1150 = vunpack.c.h.b16 %v244
    %v1151 = vunpack.c.l.b16 %v245
    %v1152 = vunpack.c.h.b16 %v245
    %v1153 = vunpack.c.l.b16 %v246
    %v1154 = vunpack.c.h.b16 %v246
    %v1155 = vunpack.c.l.b16 %v247
    %v1156 = vunpack.c.h.b16 %v247
    %v1157 = vunpack.c.l.b16 %v248
    %v1158 = vunpack.c.h.b16 %v248
    %v1159 = vunpack.c.l.b16 %v249
    %v1160 = vunpack.c.h.b16 %v249
    %v1161 = vunpack.c.l.b16 %v250
    %v1162 = vunpack.c.h.b16 %v250
    %v1163 = vunpack.c.l.b16 %v251
    %v1164 = vunpack.c.h.b16 %v251
    %v1165 = vunpack.c.l.b16 %v252
    %v1166 = vunpack.c.h.b16 %v252
    %v1167 = vunpack.c.l.b16 %v253
    %v1168 = vunpack.c.h.b16 %v253
    %v1169 = vunpack.c.l.b16 %v254
    %v1170 = vunpack.c.h.b16 %v254
    %v1171 = vunpack.c.l.b16 %v255
    %v1172 = vunpack.c.h.b16 %v255
    %v1173 = vunpack.c.l.b16 %v256
    %v1174 = vunpack.c.h.b16 %v256
    %v1175 = vunpack.c.l.b16 %v257
    %v1176 = vunpack.c.h.b16 %v257
    %v1177 = vunpack.c.l.b16 %v258
    %v1178 = vunpack.c.h.b16 %v258
    %v1179 = vunpack.c.l.b16 %v259
    %v1180 = vunpack.c.h.b16 %v259
    %v1181 = vunpack.c.l.b16 %v260
    %v1182 = vunpack.c.h.b16 %v260
    %v1183 = vunpack.c.l.b16 %v261
    %v1184 = vunpack.c.h.b16 %v261
    %v1185 = vunpack.c.l.b16 %v262
    %v1186 = vunpack.c.h.b16 %v262
    %v1187 = vunpack.c.l.b16 %v263
    %v1188 = vunpack.c.h.b16 %v263
    %v1189 = vunpack.c.l.b16 %v264
    %v1190 = vunpack.c.h.b16 %v264
    %v1191 = vunpack.c.l.b16 %v265
    %v1192 = vunpack.c.h.b16 %v265
    %v1193 = vunpack.c.l.b16 %v266
    %v1194 = vunpack.c.h.b16 %v266
    %v1195 = vunpack.c.l.b16 %v267
    %v1196 = vunpack.c.h.b16 %v267
    %v1197 = vunpack.c.l.b16 %v268
    %v1198 = vunpack.c.h.b16 %v268
    %v1199 = vunpack.c.l.b16 %v269
    %v1200 = vunpack.c.h.b16 %v269
    %v1201 = vunpack.c.l.b16 %v270
    %v1202 = vunpack.c.h.b16 %v270
    %v1203 = vunpack.c.l.b16 %v271
    %v1204 = vunpack.c.h.b16 %v271
    %v1205 = vunpack.c.l.b16 %v272
    %v1206 = vunpack.c.h.b16 %v272
    %v1207 = vunpack.c.l.b16 %v273
    %v1208 = vunpack.c.h.b16 %v273
    %v1209 = vunpack.c.l.b16 %v274
    %v1210 = vunpack.c.h.b16 %v274
    %v1211 = vunpack.c.l.b16 %v275
    %v1212 = vunpack.c.h.b16 %v275
    %v1213 = vunpack.c.l.b16 %v276
    %v1214 = vunpack.c.h.b16 %v276
    %v1215 = vunpack.c.l.b16 %v277
    %v1216 = vunpack.c.h.b16 %v277
    %v1217 = vunpack.c.l.b16 %v278
    %v1218 = vunpack.c.h.b16 %v278
    %v1219 = vunpack.c.l.b16 %v279
    %v1220 = vunpack.c.h.b16 %v279
    %v1221 = vunpack.c.l.b16 %v280
    %v1222 = vunpack.c.h.b16 %v280
    %v1223 = vunpack.c.l.b16 %v281
    %v1224 = vunpack.c.h.b16 %v281
    %v1225 = vunpack.c.l.b16 %v282
    %v1226 = vunpack.c.h.b16 %v282
    %v1227 = vunpack.c.l.b16 %v283
    %v1228 = vunpack.c.h.b16 %v283
    %v1229 = vunpack.c.l.b16 %v284
    %v1230 = vunpack.c.h.b16 %v284
    %v1231 = vunpack.c.l.b16 %v285
    %v1232 = vunpack.c.h.b16 %v285
    %v1233 = vunpack.c.l.b16 %v286
    %v1234 = vunpack.c.h.b16 %v286
    %v1235 = vunpack.c.l.b16 %v287
    %v1236 = vunpack.c.h.b16 %v287
    %v1237 = vunpack.c.l.b16 %v288
    %v1238 = vunpack.c.h.b16 %v288
    %v1239 = vunpack.c.l.b16 %v289
    %v1240 = vunpack.c.h.b16 %v289
    %v1241 = vunpack.c.l.b16 %v290
    %v1242 = vunpack.c.h.b16 %v290
    %v1243 = vunpack.c.l.b16 %v291
    %v1244 = vunpack.c.h.b16 %v291
    %v1245 = vunpack.c.l.b16 %v292
    %v1246 = vunpack.c.h.b16 %v292
    %v1247 = vunpack.c.l.b16 %v293
    %v1248 = vunpack.c.h.b16 %v293
    %v1249 = vunpack.c.l.b16 %v294
    %v1250 = vunpack.c.h.b16 %v294
    %v1251 = vunpack.c.l.b16 %v295
    %v1252 = vunpack.c.h.b16 %v295
    %v1253 = vunpack.c.l.b16 %v296
    %v1254 = vunpack.c.h.b16 %v296
    %v1255 = vunpack.c.l.b16 %v297
    %v1256 = vunpack.c.h.b16 %v297
    %v1257 = vunpack.c.l.b16 %v298
    %v1258 = vunpack.c.h.b16 %v298
    %v1259 = vunpack.c.l.b16 %v299
    %v1260 = vunpack.c.h.b16 %v299
    %v1261 = vunpack.c.l.b16 %v300
    %v1262 = vunpack.c.h.b16 %v300
    %v1263 = vunpack.c.l.b16 %v301
    %v1264 = vunpack.c.h.b16 %v301
    %v1265 = vunpack.c.l.b16 %v302
    %v1266 = vunpack.c.h.b16 %v302
    %v1267 = vunpack.c.l.b16 %v303
    %v1268 = vunpack.c.h.b16 %v303
    %v1269 = vunpack.c.l.b16 %v304
    %v1270 = vunpack.c.h.b16 %v304
    %v1271 = vunpack.c.l.b16 %v305
    %v1272 = vunpack.c.h.b16 %v305
    %v1273 = vunpack.c.l.b16 %v306
    %v1274 = vunpack.c.h.b16 %v306
    %v1275 = vunpack.c.l.b16 %v307
    %v1276 = vunpack.c.h.b16 %v307
    %v1277 = vunpack.c.l.b16 %v308
    %v1278 = vunpack.c.h.b16 %v308
    %v1279 = vunpack.c.l.b16 %v309
    %v1280 = vunpack.c.h.b16 %v309
    %v1281 = vunpack.c.l.b16 %v310
    %v1282 = vunpack.c.h.b16 %v310
    %v1283 = vunpack.c.l.b16 %v311
    %v1284 = vunpack.c.h.b16 %v311
    %v1285 = vunpack.c.l.b16 %v312
    %v1286 = vunpack.c.h.b16 %v312
    %v1287 = vunpack.c.l.b16 %v313
    %v1288 = vunpack.c.h.b16 %v313
    %v1289 = vunpack.c.l.b16 %v314
    %v1290 = vunpack.c.h.b16 %v314
    %v1291 = vunpack.c.l.b16 %v315
    %v1292 = vunpack.c.h.b16 %v315
    %v1293 = vunpack.c.l.b16 %v316
    %v1294 = vunpack.c.h.b16 %v316
    %v1295 = vunpack.c.l.b16 %v317
    %v1296 = vunpack.c.h.b16 %v317
    %v1297 = vunpack.c.l.b16 %v318
    %v1298 = vunpack.c.h.b16 %v318
    %v1299 = vunpack.c.l.b16 %v319
    %v1300 = vunpack.c.h.b16 %v319
    %v1301 = vunpack.c.l.b16 %v320
    %v1302 = vunpack.c.h.b16 %v320
    %v1303 = vunpack.c.l.b16 %v321
    %v1304 = vunpack.c.h.b16 %v321
    %v1305 = vunpack.c.l.b16 %v322
    %v1306 = vunpack.c.h.b16 %v322
    %v1307 = vunpack.c.l.b16 %v323
    %v1308 = vunpack.c.h.b16 %v323
    %v1309 = vunpack.c.l.b16 %v324
    %v1310 = vunpack.c.h.b16 %v324
    %v1311 = vunpack.c.l.b16 %v325
    %v1312 = vunpack.c.h.b16 %v325
    %v1313 = vunpack.c.l.b16 %v326
    %v1314 = vunpack.c.h.b16 %v326
    %v1315 = vunpack.c.l.b16 %v327
    %v1316 = vunpack.c.h.b16 %v327
    %v1317 = vunpack.c.l.b16 %v328
    %v1318 = vunpack.c.h.b16 %v328
    %v1319 = vunpack.c.l.b16 %v329
    %v1320 = vunpack.c.h.b16 %v329
    %v1321 = vunpack.c.l.b16 %v330
    %v1322 = vunpack.c.h.b16 %v330
    %v1323 = vunpack.c.l.b16 %v331
    %v1324 = vunpack.c.h.b16 %v331
    %v1325 = vunpack.c.l.b16 %v332
    %v1326 = vunpack.c.h.b16 %v332
    %v1327 = vunpack.c.l.b16 %v333
    %v1328 = vunpack.c.h.b16 %v333
    %v1329 = vunpack.c.l.b16 %v334
    %v1330 = vunpack.c.h.b16 %v334
    %v1331 = vunpack.c.l.b16 %v335
    %v1332 = vunpack.c.h.b16 %v335
    %v1333 = vunpack.c.l.b16 %v336
    %v1334 = vunpack.c.h.b16 %v336
    %v1335 = vunpack.c.l.b16 %v337
    %v1336 = vunpack.c.h.b16 %v337
    %v1337 = vunpack.c.l.b16 %v338
    %v1338 = vunpack.c.h.b16 %v338
    %v1339 = vunpack.c.l.b16 %v339
    %v1340 = vunpack.c.h.b16 %v339
    %v1341 = vunpack.c.l.b16 %v340
    %v1342 = vunpack.c.h.b16 %v340
    %v1343 = vunpack.c.l.b16 %v341
    %v1344 = vunpack.c.h.b16 %v341
    %v1345 = vunpack.c.l.b16 %v342
    %v1346 = vunpack.c.h.b16 %v342
    %v1347 = vunpack.c.l.b16 %v343
    %v1348 = vunpack.c.h.b16 %v343
    %v1349 = vunpack.c.l.b16 %v344
    %v1350 = vunpack.c.h.b16 %v344
    %v1351 = vunpack.c.l.b16 %v345
    %v1352 = vunpack.c.h.b16 %v345
    %v1353 = vunpack.c.l.b16 %v346
    %v1354 = vunpack.c.h.b16 %v346
    %v1355 = vunpack.c.l.b16 %v347
    %v1356 = vunpack.c.h.b16 %v347
    %v1357 = vunpack.c.l.b16 %v348
    %v1358 = vunpack.c.h.b16 %v348
    %v1359 = vunpack.c.l.b16 %v349
    %v1360 = vunpack.c.h.b16 %v349
    %v1361 = vunpack.c.l.b16 %v350
    %v1362 = vunpack.c.h.b16 %v350
    %v1363 = vunpack.c.l.b16 %v351
    %v1364 = vunpack.c.h.b16 %v351
    %v1365 = vunpack.c.l.b16 %v352
    %v1366 = vunpack.c.h.b16 %v352
    %v1367 = vunpack.c.l.b16 %v353
    %v1368 = vunpack.c.h.b16 %v353
    %v1369 = vunpack.c.l.b16 %v354
    %v1370 = vunpack.c.h.b16 %v354
    %v1371 = vunpack.c.l.b16 %v355
    %v1372 = vunpack.c.h.b16 %v355
    %v1373 = vunpack.c.l.b16 %v356
    %v1374 = vunpack.c.h.b16 %v356
    %v1375 = vunpack.c.l.b16 %v357
    %v1376 = vunpack.c.h.b16 %v357
    %v1377 = vunpack.c.l.b16 %v358
    %v1378 = vunpack.c.h.b16 %v358
    %v1379 = vunpack.c.l.b16 %v359
    %v1380 = vunpack.c.h.b16 %v359
    %v1381 = vunpack.c.l.b16 %v360
    %v1382 = vunpack.c.h.b16 %v360
    %v1383 = vunpack.c.l.b16 %v361
    %v1384 = vunpack.c.h.b16 %v361
    %v1385 = vunpack.c.l.b16 %v362
    %v1386 = vunpack.c.h.b16 %v362
    %v1387 = vunpack.c.l.b16 %v363
    %v1388 = vunpack.c.h.b16 %v363
    %v1389 = vunpack.c.l.b16 %v364
    %v1390 = vunpack.c.h.b16 %v364
    %v1391 = vunpack.c.l.b16 %v365
    %v1392 = vunpack.c.h.b16 %v365
    %v1393 = vunpack.c.l.b16 %v366
    %v1394 = vunpack.c.h.b16 %v366
    %v1395 = vpack.c.b16 %v763, %v755
    %v1396 = vpack.c.b16 %v764, %v756
    %v1397 = vpack.c.b16 %v765, %v757
    %v1398 = vpack.c.b16 %v766, %v758
    %v1399 = vpack.c.b16 %v767, %v759
    %v1400 = vpack.c.b16 %v768, %v760
    %v1401 = vpack.c.b16 %v769, %v761
    %v1402 = vpack.c.b16 %v770, %v762
    %v1403 = vpack.c.b16 %v779, %v771
    %v1404 = vpack.c.b16 %v780, %v772
    %v1405 = vpack.c.b16 %v781, %v773
    %v1406 = vpack.c.b16 %v782, %v774
    %v1407 = vpack.c.b16 %v783, %v775
    %v1408 = vpack.c.b16 %v784, %v776
    %v1409 = vpack.c.b16 %v785, %v777
    %v1410 = vpack.c.b16 %v786, %v778
    %v1411 = vpack.c.b16 %v795, %v787
    %v1412 = vpack.c.b16 %v796, %v788
    %v1413 = vpack.c.b16 %v797, %v789
    %v1414 = vpack.c.b16 %v798, %v790
    %v1415 = vpack.c.b16 %v799, %v791
    %v1416 = vpack.c.b16 %v800, %v792
    %v1417 = vpack.c.b16 %v801, %v793
    %v1418 = vpack.c.b16 %v802, %v794
    %v1419 = vpack.c.b16 %v811, %v803
    %v1420 = vpack.c.b16 %v812, %v804
    %v1421 = vpack.c.b16 %v813, %v805
    %v1422 = vpack.c.b16 %v814, %v806
    %v1423 = vpack.c.b16 %v815, %v807
    %v1424 = vpack.c.b16 %v816, %v808
    %v1425 = vpack.c.b16 %v817, %v809
    %v1426 = vpack.c.b16 %v818, %v810
    %v1427 = vpack.c.b16 %v827, %v819
    %v1428 = vpack.c.b16 %v828, %v820
    %v1429 = vpack.c.b16 %v829, %v821
    %v1430 = vpack.c.b16 %v830, %v822
    %v1431 = vpack.c.b16 %v831, %v823
    %v1432 = vpack.c.b16 %v832, %v824
    %v1433 = vpack.c.b16 %v833, %v825
    %v1434 = vpack.c.b16 %v834, %v826
    %v1435 = vpack.c.b16 %v843, %v835
    %v1436 = vpack.c.b16 %v844, %v836
    %v1437 = vpack.c.b16 %v845, %v837
    %v1438 = vpack.c.b16 %v846, %v838
    %v1439 = vpack.c.b16 %v847, %v839
    %v1440 = vpack.c.b16 %v848, %v840
    %v1441 = vpack.c.b16 %v849, %v841
    %v1442 = vpack.c.b16 %v850, %v842
    %v1443 = vpack.c.b16 %v859, %v851
    %v1444 = vpack.c.b16 %v860, %v852
    %v1445 = vpack.c.b16 %v861, %v853
    %v1446 = vpack.c.b16 %v862, %v854
    %v1447 = vpack.c.b16 %v863, %v855
    %v1448 = vpack.c.b16 %v864, %v856
    %v1449 = vpack.c.b16 %v865, %v857
    %v1450 = vpack.c.b16 %v866, %v858
    %v1451 = vpack.c.b16 %v875, %v867
    %v1452 = vpack.c.b16 %v876, %v868
    %v1453 = vpack.c.b16 %v877, %v869
    %v1454 = vpack.c.b16 %v878, %v870
    %v1455 = vpack.c.b16 %v879, %v871
    %v1456 = vpack.c.b16 %v880, %v872
    %v1457 = vpack.c.b16 %v881, %v873
    %v1458 = vpack.c.b16 %v882, %v874
    %v1459 = vpack.c.b16 %v891, %v883
    %v1460 = vpack.c.b16 %v892, %v884
    %v1461 = vpack.c.b16 %v893, %v885
    %v1462 = vpack.c.b16 %v894, %v886
    %v1463 = vpack.c.b16 %v895, %v887
    %v1464 = vpack.c.b16 %v896, %v888
    %v1465 = vpack.c.b16 %v897, %v889
    %v1466 = vpack.c.b16 %v898, %v890
    %v1467 = vpack.c.b16 %v907, %v899
    %v1468 = vpack.c.b16 %v908, %v900
    %v1469 = vpack.c.b16 %v909, %v901
    %v1470 = vpack.c.b16 %v910, %v902
    %v1471 = vpack.c.b16 %v911, %v903
    %v1472 = vpack.c.b16 %v912, %v904
    %v1473 = vpack.c.b16 %v913, %v905
    %v1474 = vpack.c.b16 %v914, %v906
    %v1475 = vpack.c.b16 %v923, %v915
    %v1476 = vpack.c.b16 %v924, %v916
    %v1477 = vpack.c.b16 %v925, %v917
    %v1478 = vpack.c.b16 %v926, %v918
    %v1479 = vpack.c.b16 %v927, %v919
    %v1480 = vpack.c.b16 %v928, %v920
    %v1481 = vpack.c.b16 %v929, %v921
    %v1482 = vpack.c.b16 %v930, %v922
    %v1483 = vpack.c.b16 %v939, %v931
    %v1484 = vpack.c.b16 %v940, %v932
    %v1485 = vpack.c.b16 %v941, %v933
    %v1486 = vpack.c.b16 %v942, %v934
    %v1487 = vpack.c.b16 %v943, %v935
    %v1488 = vpack.c.b16 %v944, %v936
    %v1489 = vpack.c.b16 %v945, %v937
    %v1490 = vpack.c.b16 %v946, %v938
    %v1491 = vpack.c.b16 %v955, %v947
    %v1492 = vpack.c.b16 %v956, %v948
    %v1493 = vpack.c.b16 %v957, %v949
    %v1494 = vpack.c.b16 %v958, %v950
    %v1495 = vpack.c.b16 %v959, %v951
    %v1496 = vpack.c.b16 %v960, %v952
    %v1497 = vpack.c.b16 %v961, %v953
    %v1498 = vpack.c.b16 %v962, %v954
    %v1499 = vpack.c.b16 %v971, %v963
    %v1500 = vpack.c.b16 %v972, %v964
    %v1501 = vpack.c.b16 %v973, %v965
    %v1502 = vpack.c.b16 %v974, %v966
    %v1503 = vpack.c.b16 %v975, %v967
    %v1504 = vpack.c.b16 %v976, %v968
    %v1505 = vpack.c.b16 %v977, %v969
    %v1506 = vpack.c.b16 %v978, %v970
    %v1507 = vpack.c.b16 %v987, %v979
    %v1508 = vpack.c.b16 %v988, %v980
    %v1509 = vpack.c.b16 %v989, %v981
    %v1510 = vpack.c.b16 %v990, %v982
    %v1511 = vpack.c.b16 %v991, %v983
    %v1512 = vpack.c.b16 %v992, %v984
    %v1513 = vpack.c.b16 %v993, %v985
    %v1514 = vpack.c.b16 %v994, %v986
    %v1515 = vpack.c.b16 %v1003, %v995
    %v1516 = vpack.c.b16 %v1004, %v996
    %v1517 = vpack.c.b16 %v1005, %v997
    %v1518 = vpack.c.b16 %v1006, %v998
    %v1519 = vpack.c.b16 %v1007, %v999
    %v1520 = vpack.c.b16 %v1008, %v1000
    %v1521 = vpack.c.b16 %v1009, %v1001
    %v1522 = vpack.c.b16 %v1010, %v1002
    %v1523 = vpack.c.b16 %v1019, %v1011
    %v1524 = vpack.c.b16 %v1020, %v1012
    %v1525 = vpack.c.b16 %v1021, %v1013
    %v1526 = vpack.c.b16 %v1022, %v1014
    %v1527 = vpack.c.b16 %v1023, %v1015
    %v1528 = vpack.c.b16 %v1024, %v1016
    %v1529 = vpack.c.b16 %v1025, %v1017
    %v1530 = vpack.c.b16 %v1026, %v1018
    %v1531 = vpack.c.b16 %v1035, %v1027
    %v1532 = vpack.c.b16 %v1036, %v1028
    %v1533 = vpack.c.b16 %v1037, %v1029
    %v1534 = vpack.c.b16 %v1038, %v1030
    %v1535 = vpack.c.b16 %v1039, %v1031
    %v1536 = vpack.c.b16 %v1040, %v1032
    %v1537 = vpack.c.b16 %v1041, %v1033
    %v1538 = vpack.c.b16 %v1042, %v1034
    %v1539 = vpack.c.b16 %v1051, %v1043
    %v1540 = vpack.c.b16 %v1052, %v1044
    %v1541 = vpack.c.b16 %v1053, %v1045
    %v1542 = vpack.c.b16 %v1054, %v1046
    %v1543 = vpack.c.b16 %v1055, %v1047
    %v1544 = vpack.c.b16 %v1056, %v1048
    %v1545 = vpack.c.b16 %v1057, %v1049
    %v1546 = vpack.c.b16 %v1058, %v1050
    %v1547 = vpack.c.b16 %v1067, %v1059
    %v1548 = vpack.c.b16 %v1068, %v1060
    %v1549 = vpack.c.b16 %v1069, %v1061
    %v1550 = vpack.c.b16 %v1070, %v1062
    %v1551 = vpack.c.b16 %v1071, %v1063
    %v1552 = vpack.c.b16 %v1072, %v1064
    %v1553 = vpack.c.b16 %v1073, %v1065
    %v1554 = vpack.c.b16 %v1074, %v1066
    %v1555 = vpack.c.b16 %v1083, %v1075
    %v1556 = vpack.c.b16 %v1084, %v1076
    %v1557 = vpack.c.b16 %v1085, %v1077
    %v1558 = vpack.c.b16 %v1086, %v1078
    %v1559 = vpack.c.b16 %v1087, %v1079
    %v1560 = vpack.c.b16 %v1088, %v1080
    %v1561 = vpack.c.b16 %v1089, %v1081
    %v1562 = vpack.c.b16 %v1090, %v1082
    %v1563 = vpack.c.b16 %v1099, %v1091
    %v1564 = vpack.c.b16 %v1100, %v1092
    %v1565 = vpack.c.b16 %v1101, %v1093
    %v1566 = vpack.c.b16 %v1102, %v1094
    %v1567 = vpack.c.b16 %v1103, %v1095
    %v1568 = vpack.c.b16 %v1104, %v1096
    %v1569 = vpack.c.b16 %v1105, %v1097
    %v1570 = vpack.c.b16 %v1106, %v1098
    %v1571 = vpack.c.b16 %v1115, %v1107
    %v1572 = vpack.c.b16 %v1116, %v1108
    %v1573 = vpack.c.b16 %v1117, %v1109
    %v1574 = vpack.c.b16 %v1118, %v1110
    %v1575 = vpack.c.b16 %v1119, %v1111
    %v1576 = vpack.c.b16 %v1120, %v1112
    %v1577 = vpack.c.b16 %v1121, %v1113
    %v1578 = vpack.c.b16 %v1122, %v1114
    %v1579 = vpack.c.b16 %v1131, %v1123
    %v1580 = vpack.c.b16 %v1132, %v1124
    %v1581 = vpack.c.b16 %v1133, %v1125
    %v1582 = vpack.c.b16 %v1134, %v1126
    %v1583 = vpack.c.b16 %v1135, %v1127
    %v1584 = vpack.c.b16 %v1136, %v1128
    %v1585 = vpack.c.b16 %v1137, %v1129
    %v1586 = vpack.c.b16 %v1138, %v1130
    %v1587 = vpack.c.b16 %v1147, %v1139
    %v1588 = vpack.c.b16 %v1148, %v1140
    %v1589 = vpack.c.b16 %v1149, %v1141
    %v1590 = vpack.c.b16 %v1150, %v1142
    %v1591 = vpack.c.b16 %v1151, %v1143
    %v1592 = vpack.c.b16 %v1152, %v1144
    %v1593 = vpack.c.b16 %v1153, %v1145
    %v1594 = vpack.c.b16 %v1154, %v1146
    %v1595 = vpack.c.b16 %v1163, %v1155
    %v1596 = vpack.c.b16 %v1164, %v1156
    %v1597 = vpack.c.b16 %v1165, %v1157
    %v1598 = vpack.c.b16 %v1166, %v1158
    %v1599 = vpack.c.b16 %v1167, %v1159
    %v1600 = vpack.c.b16 %v1168, %v1160
    %v1601 = vpack.c.b16 %v1169, %v1161
    %v1602 = vpack.c.b16 %v1170, %v1162
    %v1603 = vpack.c.b16 %v1179, %v1171
    %v1604 = vpack.c.b16 %v1180, %v1172
    %v1605 = vpack.c.b16 %v1181, %v1173
    %v1606 = vpack.c.b16 %v1182, %v1174
    %v1607 = vpack.c.b16 %v1183, %v1175
    %v1608 = vpack.c.b16 %v1184, %v1176
    %v1609 = vpack.c.b16 %v1185, %v1177
    %v1610 = vpack.c.b16 %v1186, %v1178
    %v1611 = vpack.c.b16 %v1195, %v1187
    %v1612 = vpack.c.b16 %v1196, %v1188
    %v1613 = vpack.c.b16 %v1197, %v1189
    %v1614 = vpack.c.b16 %v1198, %v1190
    %v1615 = vpack.c.b16 %v1199, %v1191
    %v1616 = vpack.c.b16 %v1200, %v1192
    %v1617 = vpack.c.b16 %v1201, %v1193
    %v1618 = vpack.c.b16 %v1202, %v1194
    %v1619 = vpack.c.b16 %v1211, %v1203
    %v1620 = vpack.c.b16 %v1212, %v1204
    %v1621 = vpack.c.b16 %v1213, %v1205
    %v1622 = vpack.c.b16 %v1214, %v1206
    %v1623 = vpack.c.b16 %v1215, %v1207
    %v1624 = vpack.c.b16 %v1216, %v1208
    %v1625 = vpack.c.b16 %v1217, %v1209
    %v1626 = vpack.c.b16 %v1218, %v1210
    %v1627 = vpack.c.b16 %v1227, %v1219
    %v1628 = vpack.c.b16 %v1228, %v1220
    %v1629 = vpack.c.b16 %v1229, %v1221
    %v1630 = vpack.c.b16 %v1230, %v1222
    %v1631 = vpack.c.b16 %v1231, %v1223
    %v1632 = vpack.c.b16 %v1232, %v1224
    %v1633 = vpack.c.b16 %v1233, %v1225
    %v1634 = vpack.c.b16 %v1234, %v1226
    %v1635 = vpack.c.b16 %v1243, %v1235
    %v1636 = vpack.c.b16 %v1244, %v1236
    %v1637 = vpack.c.b16 %v1245, %v1237
    %v1638 = vpack.c.b16 %v1246, %v1238
    %v1639 = vpack.c.b16 %v1247, %v1239
    %v1640 = vpack.c.b16 %v1248, %v1240
    %v1641 = vpack.c.b16 %v1249, %v1241
    %v1642 = vpack.c.b16 %v1250, %v1242
    %v1643 = vpack.c.b16 %v1259, %v1251
    %v1644 = vpack.c.b16 %v1260, %v1252
    %v1645 = vpack.c.b16 %v1261, %v1253
    %v1646 = vpack.c.b16 %v1262, %v1254
    %v1647 = vpack.c.b16 %v1263, %v1255
    %v1648 = vpack.c.b16 %v1264, %v1256
    %v1649 = vpack.c.b16 %v1265, %v1257
    %v1650 = vpack.c.b16 %v1266, %v1258
    %v1651 = vpack.c.b16 %v1275, %v1267
    %v1652 = vpack.c.b16 %v1276, %v1268
    %v1653 = vpack.c.b16 %v1277, %v1269
    %v1654 = vpack.c.b16 %v1278, %v1270
    %v1655 = vpack.c.b16 %v1279, %v1271
    %v1656 = vpack.c.b16 %v1280, %v1272
    %v1657 = vpack.c.b16 %v1281, %v1273
    %v1658 = vpack.c.b16 %v1282, %v1274
    %v1659 = vpack.c.b16 %v1291, %v1283
    %v1660 = vpack.c.b16 %v1292, %v1284
    %v1661 = vpack.c.b16 %v1293, %v1285
    %v1662 = vpack.c.b16 %v1294, %v1286
    %v1663 = vpack.c.b16 %v1295, %v1287
    %v1664 = vpack.c.b16 %v1296, %v1288
    %v1665 = vpack.c.b16 %v1297, %v1289
    %v1666 = vpack.c.b16 %v1298, %v1290
    %v1667 = vpack.c.b16 %v1307, %v1299
    %v1668 = vpack.c.b16 %v1308, %v1300
    %v1669 = vpack.c.b16 %v1309, %v1301
    %v1670 = vpack.c.b16 %v1310, %v1302
    %v1671 = vpack.c.b16 %v1311, %v1303
    %v1672 = vpack.c.b16 %v1312, %v1304
    %v1673 = vpack.c.b16 %v1313, %v1305
    %v1674 = vpack.c.b16 %v1314, %v1306
    %v1675 = vpack.c.b16 %v1323, %v1315
    %v1676 = vpack.c.b16 %v1324, %v1316
    %v1677 = vpack.c.b16 %v1325, %v1317
    %v1678 = vpack.c.b16 %v1326, %v1318
    %v1679 = vpack.c.b16 %v1327, %v1319
    %v1680 = vpack.c.b16 %v1328, %v1320
    %v1681 = vpack.c.b16 %v1329, %v1321
    %v1682 = vpack.c.b16 %v1330, %v1322
    %v1683 = vpack.c.b16 %v1339, %v1331
    %v1684 = vpack.c.b16 %v1340, %v1332
    %v1685 = vpack.c.b16 %v1341, %v1333
    %v1686 = vpack.c.b16 %v1342, %v1334
    %v1687 = vpack.c.b16 %v1343, %v1335
    %v1688 = vpack.c.b16 %v1344, %v1336
    %v1689 = vpack.c.b16 %v1345, %v1337
    %v1690 = vpack.c.b16 %v1346, %v1338
    %v1691 = vpack.c.b16 %v1355, %v1347
    %v1692 = vpack.c.b16 %v1356, %v1348
    %v1693 = vpack.c.b16 %v1357, %v1349
    %v1694 = vpack.c.b16 %v1358, %v1350
    %v1695 = vpack.c.b16 %v1359, %v1351
    %v1696 = vpack.c.b16 %v1360, %v1352
    %v1697 = vpack.c.b16 %v1361, %v1353
    %v1698 = vpack.c.b16 %v1362, %v1354
    %v1699 = vpack.c.b16 %v1371, %v1363
    %v1700 = vpack.c.b16 %v1372, %v1364
    %v1701 = vpack.c.b16 %v1373, %v1365
    %v1702 = vpack.c.b16 %v1374, %v1366
    %v1703 = vpack.c.b16 %v1375, %v1367
    %v1704 = vpack.c.b16 %v1376, %v1368
    %v1705 = vpack.c.b16 %v1377, %v1369
    %v1706 = vpack.c.b16 %v1378, %v1370
    %v1707 = vpack.c.b16 %v1387, %v1379
    %v1708 = vpack.c.b16 %v1388, %v1380
    %v1709 = vpack.c.b16 %v1389, %v1381
    %v1710 = vpack.c.b16 %v1390, %v1382
    %v1711 = vpack.c.b16 %v1391, %v1383
    %v1712 = vpack.c.b16 %v1392, %v1384
    %v1713 = vpack.c.b16 %v1393, %v1385
    %v1714 = vpack.c.b16 %v1394, %v1386
    %2035 = vmatprep.subr.bf16.mxu0 %v1452
    %2036 = vmatpush1.bf16.msra.mxu0 %v1451
    %2037 = vmatprep.subr.bf16.mxu0 %v1444
    %2038 = vmatpush1.bf16.msra.mxu0 %v1443
    %2039 = vmatprep.subr.bf16.mxu0 %v1436
    %2040 = vmatpush1.bf16.msra.mxu0 %v1435
    %2041 = vmatprep.subr.bf16.mxu0 %v1428
    %2042 = vmatpush1.bf16.msra.mxu0 %v1427
    %2043 = vmatprep.subr.bf16.mxu0 %v1420
    %2044 = vmatpush1.bf16.msra.mxu0 %v1419
    %2045 = vmatprep.subr.bf16.mxu0 %v1412
    %2046 = vmatpush1.bf16.msra.mxu0 %v1411
    %2047 = vmatprep.subr.bf16.mxu0 %v1404
    %2048 = vmatpush1.bf16.msra.mxu0 %v1403
    %2049 = vmatprep.subr.bf16.mxu0 %v1396
    %2050 = vmatpush1.bf16.msra.mxu0 %v1395
    %2051 = vmatprep.subr.bf16.mxu0 %v1516
    %2052 = vmatpush2.bf16.msra.mxu0 %v1515
    %2053 = vmatprep.subr.bf16.mxu0 %v1508
    %2054 = vmatpush2.bf16.msra.mxu0 %v1507
    %2055 = vmatprep.subr.bf16.mxu0 %v1500
    %2056 = vmatpush2.bf16.msra.mxu0 %v1499
    %2057 = vmatprep.subr.bf16.mxu0 %v1492
    %2058 = vmatpush2.bf16.msra.mxu0 %v1491
    %2059 = vmatprep.subr.bf16.mxu0 %v1484
    %2060 = vmatpush2.bf16.msra.mxu0 %v1483
    %2061 = vmatprep.subr.bf16.mxu0 %v1476
    %2062 = vmatpush2.bf16.msra.mxu0 %v1475
    %2063 = vmatprep.subr.bf16.mxu0 %v1468
    %2064 = vmatpush2.bf16.msra.mxu0 %v1467
    %2065 = vmatprep.subr.bf16.mxu0 %v1460
    %2066 = vmatpush2.bf16.msra.mxu0 %v1459
    %2067 = vmatprep.mubr.bf16.mxu0 %v426
    %2068 = vmatmul.mubr.bf16.gmra.mxu0 %v425
    %v2069 = vpop.f32.mrf.mxu0
    %v2070 = vadd.f32 %v372, %v2069
    %v2071 = vpop.f32.mrf.mxu0
    %v2072 = vadd.f32 %v376, %v2071
    %v2073 = vpop.f32.mrf.mxu0
    %v2074 = vadd.f32 %v372, %v2073
    %v2075 = vpop.f32.mrf.mxu0
    %v2076 = vadd.f32 %v376, %v2075
    %2077 = vdwg.mxu0
    %2078 = vmatprep.subr.bf16.mxu0 %v1580
    %2079 = vmatpush1.bf16.msra.mxu0 %v1579
    %2080 = vmatprep.subr.bf16.mxu0 %v1572
    %2081 = vmatpush1.bf16.msra.mxu0 %v1571
    %2082 = vmatprep.subr.bf16.mxu0 %v1564
    %2083 = vmatpush1.bf16.msra.mxu0 %v1563
    %2084 = vmatprep.subr.bf16.mxu0 %v1556
    %2085 = vmatpush1.bf16.msra.mxu0 %v1555
    %2086 = vmatprep.subr.bf16.mxu0 %v1548
    %2087 = vmatpush1.bf16.msra.mxu0 %v1547
    %2088 = vmatprep.subr.bf16.mxu0 %v1540
    %2089 = vmatpush1.bf16.msra.mxu0 %v1539
    %2090 = vmatprep.subr.bf16.mxu0 %v1532
    %2091 = vmatpush1.bf16.msra.mxu0 %v1531
    %2092 = vmatprep.subr.bf16.mxu0 %v1524
    %2093 = vmatpush1.bf16.msra.mxu0 %v1523
    %2094 = vmatprep.subr.bf16.mxu0 %v1644
    %2095 = vmatpush2.bf16.msra.mxu0 %v1643
    %2096 = vmatprep.subr.bf16.mxu0 %v1636
    %2097 = vmatpush2.bf16.msra.mxu0 %v1635
    %2098 = vmatprep.subr.bf16.mxu0 %v1628
    %2099 = vmatpush2.bf16.msra.mxu0 %v1627
    %2100 = vmatprep.subr.bf16.mxu0 %v1620
    %2101 = vmatpush2.bf16.msra.mxu0 %v1619
    %2102 = vmatprep.subr.bf16.mxu0 %v1612
    %2103 = vmatpush2.bf16.msra.mxu0 %v1611
    %2104 = vmatprep.subr.bf16.mxu0 %v1604
    %2105 = vmatpush2.bf16.msra.mxu0 %v1603
    %2106 = vmatprep.subr.bf16.mxu0 %v1596
    %2107 = vmatpush2.bf16.msra.mxu0 %v1595
    %2108 = vmatprep.subr.bf16.mxu0 %v1588
    %2109 = vmatpush2.bf16.msra.mxu0 %v1587
    %2110 = vmatprep.mubr.bf16.mxu0 %v428
    %2111 = vmatmul.mubr.bf16.gmra.mxu0 %v427
    %v2112 = vpop.f32.mrf.mxu0
    %v2113 = vadd.f32 %v2070, %v2112
    %v2114 = vpop.f32.mrf.mxu0
    %v2115 = vadd.f32 %v2072, %v2114
    %v2116 = vpop.f32.mrf.mxu0
    %v2117 = vadd.f32 %v2074, %v2116
    %v2118 = vpop.f32.mrf.mxu0
    %v2119 = vadd.f32 %v2076, %v2118
    %2120 = vdwg.mxu0
    %2121 = vmatprep.subr.bf16.mxu0 %v1708
    %2122 = vmatpush1.bf16.msra.mxu0 %v1707
    %2123 = vmatprep.subr.bf16.mxu0 %v1700
    %2124 = vmatpush1.bf16.msra.mxu0 %v1699
    %2125 = vmatprep.subr.bf16.mxu0 %v1692
    %2126 = vmatpush1.bf16.msra.mxu0 %v1691
    %2127 = vmatprep.subr.bf16.mxu0 %v1684
    %2128 = vmatpush1.bf16.msra.mxu0 %v1683
    %2129 = vmatprep.subr.bf16.mxu0 %v1676
    %2130 = vmatpush1.bf16.msra.mxu0 %v1675
    %2131 = vmatprep.subr.bf16.mxu0 %v1668
    %2132 = vmatpush1.bf16.msra.mxu0 %v1667
    %2133 = vmatprep.subr.bf16.mxu0 %v1660
    %2134 = vmatpush1.bf16.msra.mxu0 %v1659
    %2135 = vmatprep.subr.bf16.mxu0 %v1652
    %2136 = vmatpush1.bf16.msra.mxu0 %v1651
    %2137 = vmatprep.subr.bf16.mxu0 0
    %2138 = vmatpush2.bf16.msra.mxu0 0
    %2139 = vmatprep.subr.bf16.mxu0 0
    %2140 = vmatpush2.bf16.msra.mxu0 0
    %2141 = vmatprep.subr.bf16.mxu0 0
    %2142 = vmatpush2.bf16.msra.mxu0 0
    %2143 = vmatprep.subr.bf16.mxu0 0
    %2144 = vmatpush2.bf16.msra.mxu0 0
    %2145 = vmatprep.subr.bf16.mxu0 0
    %2146 = vmatpush2.bf16.msra.mxu0 0
    %2147 = vmatprep.subr.bf16.mxu0 0
    %2148 = vmatpush2.bf16.msra.mxu0 0
    %2149 = vmatprep.subr.bf16.mxu0 0
    %2150 = vmatpush2.bf16.msra.mxu0 0
    %2151 = vmatprep.subr.bf16.mxu0 0
    %2152 = vmatpush2.bf16.msra.mxu0 0
    %2153 = vmatprep.mubr.bf16.mxu0 0
    %2154 = vmatmul.mubr.bf16.gmra.mxu0 %v429
    %v2155 = vpop.f32.mrf.mxu0
    %v2156 = vadd.f32 %v2113, %v2155
    %v2157 = vpop.f32.mrf.mxu0
    %v2158 = vadd.f32 %v2115, %v2157
    %v2159 = vpop.f32.mrf.mxu0
    %v2160 = vadd.f32 %v2117, %v2159
    %v2161 = vpop.f32.mrf.mxu0
    %v2162 = vadd.f32 %v2119, %v2161
    %2163 = vdwg.mxu0
    %2164 = vmatprep.subr.bf16.mxu0 %v1454
    %2165 = vmatpush1.bf16.msra.mxu0 %v1453
    %2166 = vmatprep.subr.bf16.mxu0 %v1446
    %2167 = vmatpush1.bf16.msra.mxu0 %v1445
    %2168 = vmatprep.subr.bf16.mxu0 %v1438
    %2169 = vmatpush1.bf16.msra.mxu0 %v1437
    %2170 = vmatprep.subr.bf16.mxu0 %v1430
    %2171 = vmatpush1.bf16.msra.mxu0 %v1429
    %2172 = vmatprep.subr.bf16.mxu0 %v1422
    %2173 = vmatpush1.bf16.msra.mxu0 %v1421
    %2174 = vmatprep.subr.bf16.mxu0 %v1414
    %2175 = vmatpush1.bf16.msra.mxu0 %v1413
    %2176 = vmatprep.subr.bf16.mxu0 %v1406
    %2177 = vmatpush1.bf16.msra.mxu0 %v1405
    %2178 = vmatprep.subr.bf16.mxu0 %v1398
    %2179 = vmatpush1.bf16.msra.mxu0 %v1397
    %2180 = vmatprep.subr.bf16.mxu0 %v1518
    %2181 = vmatpush2.bf16.msra.mxu0 %v1517
    %2182 = vmatprep.subr.bf16.mxu0 %v1510
    %2183 = vmatpush2.bf16.msra.mxu0 %v1509
    %2184 = vmatprep.subr.bf16.mxu0 %v1502
    %2185 = vmatpush2.bf16.msra.mxu0 %v1501
    %2186 = vmatprep.subr.bf16.mxu0 %v1494
    %2187 = vmatpush2.bf16.msra.mxu0 %v1493
    %2188 = vmatprep.subr.bf16.mxu0 %v1486
    %2189 = vmatpush2.bf16.msra.mxu0 %v1485
    %2190 = vmatprep.subr.bf16.mxu0 %v1478
    %2191 = vmatpush2.bf16.msra.mxu0 %v1477
    %2192 = vmatprep.subr.bf16.mxu0 %v1470
    %2193 = vmatpush2.bf16.msra.mxu0 %v1469
    %2194 = vmatprep.subr.bf16.mxu0 %v1462
    %2195 = vmatpush2.bf16.msra.mxu0 %v1461
    %2196 = vmatprep.mubr.bf16.mxu0 %v426
    %2197 = vmatmul.mubr.bf16.gmra.mxu0 %v425
    %v2198 = vpop.f32.mrf.mxu0
    %v2199 = vadd.f32 %v380, %v2198
    %v2200 = vpop.f32.mrf.mxu0
    %v2201 = vadd.f32 %v384, %v2200
    %v2202 = vpop.f32.mrf.mxu0
    %v2203 = vadd.f32 %v380, %v2202
    %v2204 = vpop.f32.mrf.mxu0
    %v2205 = vadd.f32 %v384, %v2204
    %2206 = vdwg.mxu0
    %2207 = vmatprep.subr.bf16.mxu0 %v1582
    %2208 = vmatpush1.bf16.msra.mxu0 %v1581
    %2209 = vmatprep.subr.bf16.mxu0 %v1574
    %2210 = vmatpush1.bf16.msra.mxu0 %v1573
    %2211 = vmatprep.subr.bf16.mxu0 %v1566
    %2212 = vmatpush1.bf16.msra.mxu0 %v1565
    %2213 = vmatprep.subr.bf16.mxu0 %v1558
    %2214 = vmatpush1.bf16.msra.mxu0 %v1557
    %2215 = vmatprep.subr.bf16.mxu0 %v1550
    %2216 = vmatpush1.bf16.msra.mxu0 %v1549
    %2217 = vmatprep.subr.bf16.mxu0 %v1542
    %2218 = vmatpush1.bf16.msra.mxu0 %v1541
    %2219 = vmatprep.subr.bf16.mxu0 %v1534
    %2220 = vmatpush1.bf16.msra.mxu0 %v1533
    %2221 = vmatprep.subr.bf16.mxu0 %v1526
    %2222 = vmatpush1.bf16.msra.mxu0 %v1525
    %2223 = vmatprep.subr.bf16.mxu0 %v1646
    %2224 = vmatpush2.bf16.msra.mxu0 %v1645
    %2225 = vmatprep.subr.bf16.mxu0 %v1638
    %2226 = vmatpush2.bf16.msra.mxu0 %v1637
    %2227 = vmatprep.subr.bf16.mxu0 %v1630
    %2228 = vmatpush2.bf16.msra.mxu0 %v1629
    %2229 = vmatprep.subr.bf16.mxu0 %v1622
    %2230 = vmatpush2.bf16.msra.mxu0 %v1621
    %2231 = vmatprep.subr.bf16.mxu0 %v1614
    %2232 = vmatpush2.bf16.msra.mxu0 %v1613
    %2233 = vmatprep.subr.bf16.mxu0 %v1606
    %2234 = vmatpush2.bf16.msra.mxu0 %v1605
    %2235 = vmatprep.subr.bf16.mxu0 %v1598
    %2236 = vmatpush2.bf16.msra.mxu0 %v1597
    %2237 = vmatprep.subr.bf16.mxu0 %v1590
    %2238 = vmatpush2.bf16.msra.mxu0 %v1589
    %2239 = vmatprep.mubr.bf16.mxu0 %v428
    %2240 = vmatmul.mubr.bf16.gmra.mxu0 %v427
    %v2241 = vpop.f32.mrf.mxu0
    %v2242 = vadd.f32 %v2199, %v2241
    %v2243 = vpop.f32.mrf.mxu0
    %v2244 = vadd.f32 %v2201, %v2243
    %v2245 = vpop.f32.mrf.mxu0
    %v2246 = vadd.f32 %v2203, %v2245
    %v2247 = vpop.f32.mrf.mxu0
    %v2248 = vadd.f32 %v2205, %v2247
    %2249 = vdwg.mxu0
    %2250 = vmatprep.subr.bf16.mxu0 %v1710
    %2251 = vmatpush1.bf16.msra.mxu0 %v1709
    %2252 = vmatprep.subr.bf16.mxu0 %v1702
    %2253 = vmatpush1.bf16.msra.mxu0 %v1701
    %2254 = vmatprep.subr.bf16.mxu0 %v1694
    %2255 = vmatpush1.bf16.msra.mxu0 %v1693
    %2256 = vmatprep.subr.bf16.mxu0 %v1686
    %2257 = vmatpush1.bf16.msra.mxu0 %v1685
    %2258 = vmatprep.subr.bf16.mxu0 %v1678
    %2259 = vmatpush1.bf16.msra.mxu0 %v1677
    %2260 = vmatprep.subr.bf16.mxu0 %v1670
    %2261 = vmatpush1.bf16.msra.mxu0 %v1669
    %2262 = vmatprep.subr.bf16.mxu0 %v1662
    %2263 = vmatpush1.bf16.msra.mxu0 %v1661
    %2264 = vmatprep.subr.bf16.mxu0 %v1654
    %2265 = vmatpush1.bf16.msra.mxu0 %v1653
    %2266 = vmatprep.subr.bf16.mxu0 0
    %2267 = vmatpush2.bf16.msra.mxu0 0
    %2268 = vmatprep.subr.bf16.mxu0 0
    %2269 = vmatpush2.bf16.msra.mxu0 0
    %2270 = vmatprep.subr.bf16.mxu0 0
    %2271 = vmatpush2.bf16.msra.mxu0 0
    %2272 = vmatprep.subr.bf16.mxu0 0
    %2273 = vmatpush2.bf16.msra.mxu0 0
    %2274 = vmatprep.subr.bf16.mxu0 0
    %2275 = vmatpush2.bf16.msra.mxu0 0
    %2276 = vmatprep.subr.bf16.mxu0 0
    %2277 = vmatpush2.bf16.msra.mxu0 0
    %2278 = vmatprep.subr.bf16.mxu0 0
    %2279 = vmatpush2.bf16.msra.mxu0 0
    %2280 = vmatprep.subr.bf16.mxu0 0
    %2281 = vmatpush2.bf16.msra.mxu0 0
    %2282 = vmatprep.mubr.bf16.mxu0 0
    %2283 = vmatmul.mubr.bf16.gmra.mxu0 %v429
    %v2284 = vpop.f32.mrf.mxu0
    %v2285 = vadd.f32 %v2242, %v2284
    %v2286 = vpop.f32.mrf.mxu0
    %v2287 = vadd.f32 %v2244, %v2286
    %v2288 = vpop.f32.mrf.mxu0
    %v2289 = vadd.f32 %v2246, %v2288
    %v2290 = vpop.f32.mrf.mxu0
    %v2291 = vadd.f32 %v2248, %v2290
    %2292 = vdwg.mxu0
    %2293 = vmatprep.subr.bf16.mxu0 %v1456
    %2294 = vmatpush1.bf16.msra.mxu0 %v1455
    %2295 = vmatprep.subr.bf16.mxu0 %v1448
    %2296 = vmatpush1.bf16.msra.mxu0 %v1447
    %2297 = vmatprep.subr.bf16.mxu0 %v1440
    %2298 = vmatpush1.bf16.msra.mxu0 %v1439
    %2299 = vmatprep.subr.bf16.mxu0 %v1432
    %2300 = vmatpush1.bf16.msra.mxu0 %v1431
    %2301 = vmatprep.subr.bf16.mxu0 %v1424
    %2302 = vmatpush1.bf16.msra.mxu0 %v1423
    %2303 = vmatprep.subr.bf16.mxu0 %v1416
    %2304 = vmatpush1.bf16.msra.mxu0 %v1415
    %2305 = vmatprep.subr.bf16.mxu0 %v1408
    %2306 = vmatpush1.bf16.msra.mxu0 %v1407
    %2307 = vmatprep.subr.bf16.mxu0 %v1400
    %2308 = vmatpush1.bf16.msra.mxu0 %v1399
    %2309 = vmatprep.subr.bf16.mxu0 %v1520
    %2310 = vmatpush2.bf16.msra.mxu0 %v1519
    %2311 = vmatprep.subr.bf16.mxu0 %v1512
    %2312 = vmatpush2.bf16.msra.mxu0 %v1511
    %2313 = vmatprep.subr.bf16.mxu0 %v1504
    %2314 = vmatpush2.bf16.msra.mxu0 %v1503
    %2315 = vmatprep.subr.bf16.mxu0 %v1496
    %2316 = vmatpush2.bf16.msra.mxu0 %v1495
    %2317 = vmatprep.subr.bf16.mxu0 %v1488
    %2318 = vmatpush2.bf16.msra.mxu0 %v1487
    %2319 = vmatprep.subr.bf16.mxu0 %v1480
    %2320 = vmatpush2.bf16.msra.mxu0 %v1479
    %2321 = vmatprep.subr.bf16.mxu0 %v1472
    %2322 = vmatpush2.bf16.msra.mxu0 %v1471
    %2323 = vmatprep.subr.bf16.mxu0 %v1464
    %2324 = vmatpush2.bf16.msra.mxu0 %v1463
    %2325 = vmatprep.mubr.bf16.mxu0 %v426
    %2326 = vmatmul.mubr.bf16.gmra.mxu0 %v425
    %v2327 = vpop.f32.mrf.mxu0
    %v2328 = vadd.f32 %v388, %v2327
    %v2329 = vpop.f32.mrf.mxu0
    %v2330 = vadd.f32 %v392, %v2329
    %v2331 = vpop.f32.mrf.mxu0
    %v2332 = vadd.f32 %v388, %v2331
    %v2333 = vpop.f32.mrf.mxu0
    %v2334 = vadd.f32 %v392, %v2333
    %2335 = vdwg.mxu0
    %2336 = vmatprep.subr.bf16.mxu0 %v1584
    %2337 = vmatpush1.bf16.msra.mxu0 %v1583
    %2338 = vmatprep.subr.bf16.mxu0 %v1576
    %2339 = vmatpush1.bf16.msra.mxu0 %v1575
    %2340 = vmatprep.subr.bf16.mxu0 %v1568
    %2341 = vmatpush1.bf16.msra.mxu0 %v1567
    %2342 = vmatprep.subr.bf16.mxu0 %v1560
    %2343 = vmatpush1.bf16.msra.mxu0 %v1559
    %2344 = vmatprep.subr.bf16.mxu0 %v1552
    %2345 = vmatpush1.bf16.msra.mxu0 %v1551
    %2346 = vmatprep.subr.bf16.mxu0 %v1544
    %2347 = vmatpush1.bf16.msra.mxu0 %v1543
    %2348 = vmatprep.subr.bf16.mxu0 %v1536
    %2349 = vmatpush1.bf16.msra.mxu0 %v1535
    %2350 = vmatprep.subr.bf16.mxu0 %v1528
    %2351 = vmatpush1.bf16.msra.mxu0 %v1527
    %2352 = vmatprep.subr.bf16.mxu0 %v1648
    %2353 = vmatpush2.bf16.msra.mxu0 %v1647
    %2354 = vmatprep.subr.bf16.mxu0 %v1640
    %2355 = vmatpush2.bf16.msra.mxu0 %v1639
    %2356 = vmatprep.subr.bf16.mxu0 %v1632
    %2357 = vmatpush2.bf16.msra.mxu0 %v1631
    %2358 = vmatprep.subr.bf16.mxu0 %v1624
    %2359 = vmatpush2.bf16.msra.mxu0 %v1623
    %2360 = vmatprep.subr.bf16.mxu0 %v1616
    %2361 = vmatpush2.bf16.msra.mxu0 %v1615
    %2362 = vmatprep.subr.bf16.mxu0 %v1608
    %2363 = vmatpush2.bf16.msra.mxu0 %v1607
    %2364 = vmatprep.subr.bf16.mxu0 %v1600
    %2365 = vmatpush2.bf16.msra.mxu0 %v1599
    %2366 = vmatprep.subr.bf16.mxu0 %v1592
    %2367 = vmatpush2.bf16.msra.mxu0 %v1591
    %2368 = vmatprep.mubr.bf16.mxu0 %v428
    %2369 = vmatmul.mubr.bf16.gmra.mxu0 %v427
    %v2370 = vpop.f32.mrf.mxu0
    %v2371 = vadd.f32 %v2328, %v2370
    %v2372 = vpop.f32.mrf.mxu0
    %v2373 = vadd.f32 %v2330, %v2372
    %v2374 = vpop.f32.mrf.mxu0
    %v2375 = vadd.f32 %v2332, %v2374
    %v2376 = vpop.f32.mrf.mxu0
    %v2377 = vadd.f32 %v2334, %v2376
    %2378 = vdwg.mxu0
    %2379 = vmatprep.subr.bf16.mxu0 %v1712
    %2380 = vmatpush1.bf16.msra.mxu0 %v1711
    %2381 = vmatprep.subr.bf16.mxu0 %v1704
    %2382 = vmatpush1.bf16.msra.mxu0 %v1703
    %2383 = vmatprep.subr.bf16.mxu0 %v1696
    %2384 = vmatpush1.bf16.msra.mxu0 %v1695
    %2385 = vmatprep.subr.bf16.mxu0 %v1688
    %2386 = vmatpush1.bf16.msra.mxu0 %v1687
    %2387 = vmatprep.subr.bf16.mxu0 %v1680
    %2388 = vmatpush1.bf16.msra.mxu0 %v1679
    %2389 = vmatprep.subr.bf16.mxu0 %v1672
    %2390 = vmatpush1.bf16.msra.mxu0 %v1671
    %2391 = vmatprep.subr.bf16.mxu0 %v1664
    %2392 = vmatpush1.bf16.msra.mxu0 %v1663
    %2393 = vmatprep.subr.bf16.mxu0 %v1656
    %2394 = vmatpush1.bf16.msra.mxu0 %v1655
    %2395 = vmatprep.subr.bf16.mxu0 0
    %2396 = vmatpush2.bf16.msra.mxu0 0
    %2397 = vmatprep.subr.bf16.mxu0 0
    %2398 = vmatpush2.bf16.msra.mxu0 0
    %2399 = vmatprep.subr.bf16.mxu0 0
    %2400 = vmatpush2.bf16.msra.mxu0 0
    %2401 = vmatprep.subr.bf16.mxu0 0
    %2402 = vmatpush2.bf16.msra.mxu0 0
    %2403 = vmatprep.subr.bf16.mxu0 0
    %2404 = vmatpush2.bf16.msra.mxu0 0
    %2405 = vmatprep.subr.bf16.mxu0 0
    %2406 = vmatpush2.bf16.msra.mxu0 0
    %2407 = vmatprep.subr.bf16.mxu0 0
    %2408 = vmatpush2.bf16.msra.mxu0 0
    %2409 = vmatprep.subr.bf16.mxu0 0
    %2410 = vmatpush2.bf16.msra.mxu0 0
    %2411 = vmatprep.mubr.bf16.mxu0 0
    %2412 = vmatmul.mubr.bf16.gmra.mxu0 %v429
    %v2413 = vpop.f32.mrf.mxu0
    %v2414 = vadd.f32 %v2371, %v2413
    %v2415 = vpop.f32.mrf.mxu0
    %v2416 = vadd.f32 %v2373, %v2415
    %v2417 = vpop.f32.mrf.mxu0
    %v2418 = vadd.f32 %v2375, %v2417
    %v2419 = vpop.f32.mrf.mxu0
    %v2420 = vadd.f32 %v2377, %v2419
    %2421 = vdwg.mxu0
    %2422 = vmatprep.subr.bf16.mxu0 %v1458
    %2423 = vmatpush1.bf16.msra.mxu0 %v1457
    %2424 = vmatprep.subr.bf16.mxu0 %v1450
    %2425 = vmatpush1.bf16.msra.mxu0 %v1449
    %2426 = vmatprep.subr.bf16.mxu0 %v1442
    %2427 = vmatpush1.bf16.msra.mxu0 %v1441
    %2428 = vmatprep.subr.bf16.mxu0 %v1434
    %2429 = vmatpush1.bf16.msra.mxu0 %v1433
    %2430 = vmatprep.subr.bf16.mxu0 %v1426
    %2431 = vmatpush1.bf16.msra.mxu0 %v1425
    %2432 = vmatprep.subr.bf16.mxu0 %v1418
    %2433 = vmatpush1.bf16.msra.mxu0 %v1417
    %2434 = vmatprep.subr.bf16.mxu0 %v1410
    %2435 = vmatpush1.bf16.msra.mxu0 %v1409
    %2436 = vmatprep.subr.bf16.mxu0 %v1402
    %2437 = vmatpush1.bf16.msra.mxu0 %v1401
    %2438 = vmatprep.subr.bf16.mxu0 %v1522
    %2439 = vmatpush2.bf16.msra.mxu0 %v1521
    %2440 = vmatprep.subr.bf16.mxu0 %v1514
    %2441 = vmatpush2.bf16.msra.mxu0 %v1513
    %2442 = vmatprep.subr.bf16.mxu0 %v1506
    %2443 = vmatpush2.bf16.msra.mxu0 %v1505
    %2444 = vmatprep.subr.bf16.mxu0 %v1498
    %2445 = vmatpush2.bf16.msra.mxu0 %v1497
    %2446 = vmatprep.subr.bf16.mxu0 %v1490
    %2447 = vmatpush2.bf16.msra.mxu0 %v1489
    %2448 = vmatprep.subr.bf16.mxu0 %v1482
    %2449 = vmatpush2.bf16.msra.mxu0 %v1481
    %2450 = vmatprep.subr.bf16.mxu0 %v1474
    %2451 = vmatpush2.bf16.msra.mxu0 %v1473
    %2452 = vmatprep.subr.bf16.mxu0 %v1466
    %2453 = vmatpush2.bf16.msra.mxu0 %v1465
    %2454 = vmatprep.mubr.bf16.mxu0 %v426
    %2455 = vmatmul.mubr.bf16.gmra.mxu0 %v425
    %v2456 = vpop.f32.mrf.mxu0
    %v2457 = vadd.f32 %v396, %v2456
    %v2458 = vpop.f32.mrf.mxu0
    %v2459 = vadd.f32 %v400, %v2458
    %v2460 = vpop.f32.mrf.mxu0
    %v2461 = vadd.f32 %v396, %v2460
    %v2462 = vpop.f32.mrf.mxu0
    %v2463 = vadd.f32 %v400, %v2462
    %2464 = vdwg.mxu0
    %2465 = vmatprep.subr.bf16.mxu0 %v1586
    %2466 = vmatpush1.bf16.msra.mxu0 %v1585
    %2467 = vmatprep.subr.bf16.mxu0 %v1578
    %2468 = vmatpush1.bf16.msra.mxu0 %v1577
    %2469 = vmatprep.subr.bf16.mxu0 %v1570
    %2470 = vmatpush1.bf16.msra.mxu0 %v1569
    %2471 = vmatprep.subr.bf16.mxu0 %v1562
    %2472 = vmatpush1.bf16.msra.mxu0 %v1561
    %2473 = vmatprep.subr.bf16.mxu0 %v1554
    %2474 = vmatpush1.bf16.msra.mxu0 %v1553
    %2475 = vmatprep.subr.bf16.mxu0 %v1546
    %2476 = vmatpush1.bf16.msra.mxu0 %v1545
    %2477 = vmatprep.subr.bf16.mxu0 %v1538
    %2478 = vmatpush1.bf16.msra.mxu0 %v1537
    %2479 = vmatprep.subr.bf16.mxu0 %v1530
    %2480 = vmatpush1.bf16.msra.mxu0 %v1529
    %2481 = vmatprep.subr.bf16.mxu0 %v1650
    %2482 = vmatpush2.bf16.msra.mxu0 %v1649
    %2483 = vmatprep.subr.bf16.mxu0 %v1642
    %2484 = vmatpush2.bf16.msra.mxu0 %v1641
    %2485 = vmatprep.subr.bf16.mxu0 %v1634
    %2486 = vmatpush2.bf16.msra.mxu0 %v1633
    %2487 = vmatprep.subr.bf16.mxu0 %v1626
    %2488 = vmatpush2.bf16.msra.mxu0 %v1625
    %2489 = vmatprep.subr.bf16.mxu0 %v1618
    %2490 = vmatpush2.bf16.msra.mxu0 %v1617
    %2491 = vmatprep.subr.bf16.mxu0 %v1610
    %2492 = vmatpush2.bf16.msra.mxu0 %v1609
    %2493 = vmatprep.subr.bf16.mxu0 %v1602
    %2494 = vmatpush2.bf16.msra.mxu0 %v1601
    %2495 = vmatprep.subr.bf16.mxu0 %v1594
    %2496 = vmatpush2.bf16.msra.mxu0 %v1593
    %2497 = vmatprep.mubr.bf16.mxu0 %v428
    %2498 = vmatmul.mubr.bf16.gmra.mxu0 %v427
    %v2499 = vpop.f32.mrf.mxu0
    %v2500 = vadd.f32 %v2457, %v2499
    %v2501 = vpop.f32.mrf.mxu0
    %v2502 = vadd.f32 %v2459, %v2501
    %v2503 = vpop.f32.mrf.mxu0
    %v2504 = vadd.f32 %v2461, %v2503
    %v2505 = vpop.f32.mrf.mxu0
    %v2506 = vadd.f32 %v2463, %v2505
    %2507 = vdwg.mxu0
    %2508 = vmatprep.subr.bf16.mxu0 %v1714
    %2509 = vmatpush1.bf16.msra.mxu0 %v1713
    %2510 = vmatprep.subr.bf16.mxu0 %v1706
    %2511 = vmatpush1.bf16.msra.mxu0 %v1705
    %2512 = vmatprep.subr.bf16.mxu0 %v1698
    %2513 = vmatpush1.bf16.msra.mxu0 %v1697
    %2514 = vmatprep.subr.bf16.mxu0 %v1690
    %2515 = vmatpush1.bf16.msra.mxu0 %v1689
    %2516 = vmatprep.subr.bf16.mxu0 %v1682
    %2517 = vmatpush1.bf16.msra.mxu0 %v1681
    %2518 = vmatprep.subr.bf16.mxu0 %v1674
    %2519 = vmatpush1.bf16.msra.mxu0 %v1673
    %2520 = vmatprep.subr.bf16.mxu0 %v1666
    %2521 = vmatpush1.bf16.msra.mxu0 %v1665
    %2522 = vmatprep.subr.bf16.mxu0 %v1658
    %2523 = vmatpush1.bf16.msra.mxu0 %v1657
    %2524 = vmatprep.subr.bf16.mxu0 0
    %2525 = vmatpush2.bf16.msra.mxu0 0
    %2526 = vmatprep.subr.bf16.mxu0 0
    %2527 = vmatpush2.bf16.msra.mxu0 0
    %2528 = vmatprep.subr.bf16.mxu0 0
    %2529 = vmatpush2.bf16.msra.mxu0 0
    %2530 = vmatprep.subr.bf16.mxu0 0
    %2531 = vmatpush2.bf16.msra.mxu0 0
    %2532 = vmatprep.subr.bf16.mxu0 0
    %2533 = vmatpush2.bf16.msra.mxu0 0
    %2534 = vmatprep.subr.bf16.mxu0 0
    %2535 = vmatpush2.bf16.msra.mxu0 0
    %2536 = vmatprep.subr.bf16.mxu0 0
    %2537 = vmatpush2.bf16.msra.mxu0 0
    %2538 = vmatprep.subr.bf16.mxu0 0
    %2539 = vmatpush2.bf16.msra.mxu0 0
    %2540 = vmatprep.mubr.bf16.mxu0 0
    %2541 = vmatmul.mubr.bf16.gmra.mxu0 %v429
    %v2542 = vpop.f32.mrf.mxu0
    %v2543 = vadd.f32 %v2500, %v2542
    %v2544 = vpop.f32.mrf.mxu0
    %v2545 = vadd.f32 %v2502, %v2544
    %v2546 = vpop.f32.mrf.mxu0
    %v2547 = vadd.f32 %v2504, %v2546
    %v2548 = vpop.f32.mrf.mxu0
    %v2549 = vadd.f32 %v2506, %v2548
    %2550 = vdwg.mxu0
    %2551 = vst [vmem:[%s3] sm:$0xff] %v2156
    %2552 = vst [vmem:[%s3 + $0x8] sm:$0xff] %v2158
    %2553 = vst [vmem:[%s3 + $0x10] sm:$0xff] %v2285
    %2554 = vst [vmem:[%s3 + $0x18] sm:$0xff] %v2287
    %2555 = vst [vmem:[%s3 + $0x20] sm:$0xff] %v2414
    %2556 = vst [vmem:[%s3 + $0x28] sm:$0xff] %v2416
    %2557 = vst [vmem:[%s3 + $0x30] sm:$0xff] %v2543
    %2558 = vst [vmem:[%s3 + $0x38] sm:$0xff] %v2545
    %2559 = vst [vmem:[%s3 + $0x40] sm:$0xff] %v2160
    %2560 = vst [vmem:[%s3 + $0x48] sm:$0xff] %v2162
    %2561 = vst [vmem:[%s3 + $0x50] sm:$0xff] %v2289
    %2562 = vst [vmem:[%s3 + $0x58] sm:$0xff] %v2291
    %2563 = vst [vmem:[%s3 + $0x60] sm:$0xff] %v2418
    %2564 = vst [vmem:[%s3 + $0x68] sm:$0xff] %v2420
    %2565 = vst [vmem:[%s3 + $0x70] sm:$0xff] %v2547
    %2566 = vst [vmem:[%s3 + $0x78] sm:$0xff] %v2549
    // Predicated region
    $region22: #{forward.1} parent=1 // pred_check
      _
    $region23: #{forward.1} parent=1 // pred_check_branch
      %2568 = sbr.rel (0) target = $region25
    $region24: #{forward.1} parent=1 // pred_region
      _
    $region25: #{forward.1} parent=1 // pred_fallthru
      _
    // Predicated region
    $region26: #{forward.1} parent=1 // pred_check
      _
    $region27: #{forward.1} parent=1 // pred_check_branch
      %2570 = sbr.rel (0) target = $region29
    $region28: #{forward.1} parent=1 // pred_region
      _
    $region29: #{forward.1} parent=1 // pred_fallthru
      _
    %2571 = vsyncpa [#allocation3], 1
    %2572 = vsyncpa [#allocation5], 1

</llo_original>
